<compile_context>
chip_gen: v5e
topology: v5e:2x2
jax: 0.10.0
libtpu: 0.0.40
codegen_flags: <defaults>
</compile_context>

<pallas_src>
import math

import jax
import jax.numpy as jnp
from jax import lax
from jax.experimental import pallas as pl
from jax.experimental.pallas import tpu as pltpu


def _erf(x):
    """Abramowitz & Stegun 7.1.26 rational approximation of erf (|err| < 1.5e-7).

    Built only from mul/add/abs/where/exp so it lowers on every TPU generation;
    matches torch.nn.GELU()'s exact (erf-based) GELU well below f32 matmul noise.
    """
    a1, a2, a3, a4, a5 = (0.254829592, -0.284496736, 1.421413741,
                          -1.453152027, 1.061405429)
    p = 0.3275911
    s = jnp.where(x >= 0.0, 1.0, -1.0)
    ax = jnp.abs(x)
    t = 1.0 / (1.0 + p * ax)
    poly = ((((a5 * t + a4) * t + a3) * t + a2) * t + a1) * t
    return s * (1.0 - poly * jnp.exp(-ax * ax))


def _gelu_exact(x):
    # torch nn.GELU() default is the exact erf formulation, not the tanh approximation.
    return 0.5 * x * (1.0 + _erf(x * 0.7071067811865476))


def _make_mlp_kernel(use_bias):
    def kernel(*refs):
        if use_bias:
            x_ref, w1_ref, b1_ref, w2_ref, b2_ref, out_ref, acc_ref = refs
        else:
            x_ref, w1_ref, w2_ref, out_ref, acc_ref = refs
            b1_ref = b2_ref = None

        j = pl.program_id(1)  # hidden-dim (reduction) axis

        @pl.when(j == 0)
        def _init():
            if use_bias:
                acc_ref[...] = (jnp.zeros_like(acc_ref)
                                + b2_ref[...].astype(jnp.float32))
            else:
                acc_ref[...] = jnp.zeros_like(acc_ref)

        # fc1 on this hidden block: (bm, C) @ (C, bh) -> (bm, bh), f32 accumulation on MXU.
        h = jnp.dot(x_ref[...], w1_ref[...], preferred_element_type=jnp.float32)
        if use_bias:
            h = h + b1_ref[...].astype(jnp.float32)
        a = _gelu_exact(h)  # f32 elementwise (VPU/EUP)

        # fc2 partial contraction over this hidden block, accumulated in f32 scratch.
        acc_ref[...] += jnp.dot(a.astype(w2_ref.dtype), w2_ref[...],
                                preferred_element_type=jnp.float32)

        @pl.when(j == pl.num_programs(1) - 1)
        def _finalize():
            out_ref[...] = acc_ref[...].astype(out_ref.dtype)

    return kernel


def mlp_pallas(x, w1, w2, b1=None, b2=None, *, block_m=256, block_h=512,
               out_dtype=None):
    """y = GELU(x @ w1 + b1) @ w2 + b2 applied over the last axis of x.

    w1: (n_embd, 4*n_embd), w2: (4*n_embd, n_embd) -- torch Linear weights
    pre-transposed so every kernel matmul is `h @ W`.
    """
    assert (b1 is None) == (b2 is None)
    use_bias = b1 is not None
    orig_shape = x.shape
    C = orig_shape[-1]
    H = w1.shape[-1]
    assert w1.shape == (C, H) and w2.shape == (H, C)
    M = math.prod(orig_shape[:-1])
    out_dtype = x.dtype if out_dtype is None else out_dtype

    x2 = x.reshape(M, C)
    bm = M if M <= block_m else block_m
    bh = H if H <= block_h else block_h
    assert M % bm == 0 and H % bh == 0, "simple tiling requires divisible dims"
    if bm < M:
        assert bm % 8 == 0, "row tile must be a multiple of 8 sublanes"
    if bh < H:
        assert bh % 128 == 0, "hidden tile must be a multiple of 128 lanes"
    grid = (M // bm, H // bh)

    in_specs = [pl.BlockSpec((bm, C), lambda i, j: (i, 0)),    # activation row block
                pl.BlockSpec((C, bh), lambda i, j: (0, j))]    # fc1 weight column block
    inputs = [x2, w1]
    if use_bias:
        in_specs.append(pl.BlockSpec((1, bh), lambda i, j: (0, j)))
        inputs.append(b1.reshape(1, H))
    in_specs.append(pl.BlockSpec((bh, C), lambda i, j: (j, 0)))  # fc2 weight row block
    inputs.append(w2)
    if use_bias:
        in_specs.append(pl.BlockSpec((1, C), lambda i, j: (0, 0)))
        inputs.append(b2.reshape(1, C))

    out = pl.pallas_call(
        _make_mlp_kernel(use_bias),
        out_shape=jax.ShapeDtypeStruct((M, C), out_dtype),
        grid_spec=pltpu.PrefetchScalarGridSpec(
            num_scalar_prefetch=0,
            grid=grid,
            in_specs=in_specs,
            out_specs=pl.BlockSpec((bm, C), lambda i, j: (i, 0)),  # lane-dense output
            scratch_shapes=[pltpu.VMEM((bm, C), jnp.float32)],     # fc2 accumulator
        ),
        compiler_params=pltpu.CompilerParams(
            # rows are independent (megacore-shardable); hidden dim is a reduction.
            dimension_semantics=("parallel", "arbitrary"),
            # sized against the v7x 64 MiB VMEM budget; default tiles fit with headroom.
            vmem_limit_bytes=64 * 1024 * 1024,
        ),
    )(*inputs)
    return out.reshape(orig_shape)


def mlp_reference(x, w1, w2, b1=None, b2=None, *, compute_dtype=None,
                  precision=None):
    """Pure-JAX replica of the PyTorch forward (exact erf GELU)."""
    cd = x.dtype if compute_dtype is None else compute_dtype
    h = jnp.dot(x.astype(cd), w1.astype(cd),
                preferred_element_type=jnp.float32, precision=precision)
    if b1 is not None:
        h = h + b1.astype(jnp.float32)
    a = jax.nn.gelu(h, approximate=False)
    y = jnp.dot(a.astype(cd), w2.astype(cd),
                preferred_element_type=jnp.float32, precision=precision)
    if b2 is not None:
        y = y + b2.astype(jnp.float32)
    return y


if __name__ == "__main__":
    B, T, C = 2, 64, 128          # n_embd = 128 (small, but exercises a (2,2) grid)
    H = 4 * C
    key = jax.random.PRNGKey(0)
    kx, kw1, kb1, kw2, kb2 = jax.random.split(key, 5)
    x = jax.random.normal(kx, (B, T, C), jnp.float32)
    bound1 = 1.0 / math.sqrt(C)
    w1 = jax.random.uniform(kw1, (C, H), jnp.float32, -bound1, bound1)
    b1 = jax.random.uniform(kb1, (H,), jnp.float32, -bound1, bound1)
    bound2 = 1.0 / math.sqrt(H)
    w2 = jax.random.uniform(kw2, (H, C), jnp.float32, -bound2, bound2)
    b2 = jax.random.uniform(kb2, (C,), jnp.float32, -bound2, bound2)

    x2 = x.reshape(-1, C)

    # --- bf16-compute path (MXU-native inputs, f32 accumulation), use_bias=True ---
    out_bf16 = mlp_pallas(x.astype(jnp.bfloat16), w1.astype(jnp.bfloat16),
                          w2.astype(jnp.bfloat16), b1, b2,
                          block_m=64, block_h=256, out_dtype=jnp.float32)
    out_bf16 = jax.block_until_ready(out_bf16)
    ref_bf16 = mlp_reference(x2, w1, w2, b1, b2,
                             compute_dtype=jnp.bfloat16).reshape(B, T, C)
    err_b = float(jnp.max(jnp.abs(out_bf16 - ref_bf16)))
    assert out_bf16.shape == (B, T, C)
    assert err_b < 5e-3, f"bf16 path mismatch vs bf16 reference: {err_b}"

    # --- f32 path (module's native dtype), vs highest-precision f32 reference ---
    out_f32 = mlp_pallas(x, w1, w2, b1, b2, block_m=64, block_h=256)
    out_f32 = jax.block_until_ready(out_f32)
    ref_f32 = mlp_reference(x2, w1, w2, b1, b2,
                            precision=lax.Precision.HIGHEST).reshape(B, T, C)
    err_f = float(jnp.max(jnp.abs(out_f32 - ref_f32)))
    assert out_f32.shape == (B, T, C)
    assert err_f < 5e-2, f"f32 path mismatch vs f32 reference: {err_f}"

    # bf16-compute result also stays close to the exact f32 module output (sanity).
    err_x = float(jnp.max(jnp.abs(out_bf16 - ref_f32)))
    assert err_x < 1e-1, f"bf16 path too far from f32 module semantics: {err_x}"

    print("KERNEL_OK")
</pallas_src>

<mosaic_0001>
module attributes {stable_mosaic.version = 11 : i64} {
  func.func @kernel(%arg0: i32, %arg1: i32, %arg2: memref<64x128xbf16, #tpu.memory_space<vmem>>, %arg3: memref<128x256xbf16, #tpu.memory_space<vmem>>, %arg4: memref<1x256xf32, #tpu.memory_space<vmem>>, %arg5: memref<256x128xbf16, #tpu.memory_space<vmem>>, %arg6: memref<1x128xf32, #tpu.memory_space<vmem>>, %arg7: memref<64x128xf32, #tpu.memory_space<vmem>>, %arg8: memref<64x128xf32, #tpu.memory_space<vmem>>) attributes {dimension_semantics = [#tpu.dimension_semantics<parallel>, #tpu.dimension_semantics<arbitrary>], iteration_bounds = array<i64: 2, 2>, scalar_prefetch = 0 : i64, scratch_operands = 1 : i64, tpu.core_type = #tpu.core_type<tc>, window_params = [{transform_indices = @transform_0, window_bounds = array<i64: 64, 128>}, {transform_indices = @transform_1, window_bounds = array<i64: 128, 256>}, {transform_indices = @transform_2, window_bounds = array<i64: 1, 256>}, {transform_indices = @transform_3, window_bounds = array<i64: 256, 128>}, {pipeline_mode = #tpu.pipeline_mode<synchronous>, transform_indices = @transform_4, window_bounds = array<i64: 1, 128>}, {transform_indices = @transform_5, window_bounds = array<i64: 64, 128>}]} {
    %c0_i32 = arith.constant 0 : i32
    %0 = arith.cmpi eq, %arg1, %c0_i32 : i32
    %1 = arith.extui %0 : i1 to i32
    %c0_i32_0 = arith.constant 0 : i32
    %2 = arith.cmpi ne, %1, %c0_i32_0 : i32
    scf.if %2 {
      %cst_30 = arith.constant 0.000000e+00 : f32
      %59 = vector.broadcast %cst_30 : f32 to vector<64x128xf32>
      %c0_31 = arith.constant 0 : index
      %c0_32 = arith.constant 0 : index
      %60 = vector.load %arg6[%c0_31, %c0_32] : memref<1x128xf32, #tpu.memory_space<vmem>>, vector<1x128xf32>
      %61 = vector.broadcast %60 : vector<1x128xf32> to vector<64x128xf32>
      %62 = arith.addf %59, %61 : vector<64x128xf32>
      %c0_33 = arith.constant 0 : index
      %c0_34 = arith.constant 0 : index
      %63 = vector.load %arg8[%c0_33, %c0_34] : memref<64x128xf32, #tpu.memory_space<vmem>>, vector<64x128xf32>
      tpu.vector_store %arg8[%c0_33, %c0_34], %62 {strides = array<i32>} : memref<64x128xf32, #tpu.memory_space<vmem>>, vector<64x128xf32>,
    } else {
    }
    %c0 = arith.constant 0 : index
    %c0_1 = arith.constant 0 : index
    %3 = vector.load %arg2[%c0, %c0_1] : memref<64x128xbf16, #tpu.memory_space<vmem>>, vector<64x128xbf16>
    %c0_2 = arith.constant 0 : index
    %c0_3 = arith.constant 0 : index
    %4 = vector.load %arg3[%c0_2, %c0_3] : memref<128x256xbf16, #tpu.memory_space<vmem>>, vector<128x256xbf16>
    %cst = arith.constant dense<0.000000e+00> : vector<64x256xf32>
    %5 = tpu.matmul %3, %4, %cst {dimension_numbers = #tpu.dot_dimension_numbers<[1], [0], [0], [1], [0, 0, 1, 1], [], []>} : vector<64x128xbf16>, vector<128x256xbf16>, vector<64x256xf32> -> vector<64x256xf32>
    %c0_4 = arith.constant 0 : index
    %c0_5 = arith.constant 0 : index
    %6 = vector.load %arg4[%c0_4, %c0_5] : memref<1x256xf32, #tpu.memory_space<vmem>>, vector<1x256xf32>
    %7 = vector.broadcast %6 : vector<1x256xf32> to vector<64x256xf32>
    %8 = arith.addf %5, %7 : vector<64x256xf32>
    %cst_6 = arith.constant 5.000000e-01 : f32
    %9 = vector.broadcast %cst_6 : f32 to vector<64x256xf32>
    %10 = arith.mulf %9, %8 : vector<64x256xf32>
    %cst_7 = arith.constant 0.707106769 : f32
    %11 = vector.broadcast %cst_7 : f32 to vector<64x256xf32>
    %12 = arith.mulf %8, %11 : vector<64x256xf32>
    %cst_8 = arith.constant 0.000000e+00 : f32
    %13 = vector.broadcast %cst_8 : f32 to vector<64x256xf32>
    %14 = arith.cmpf oge, %12, %13 : vector<64x256xf32>
    %cst_9 = arith.constant 1.000000e+00 : f32
    %cst_10 = arith.constant -1.000000e+00 : f32
    %15 = vector.broadcast %cst_9 : f32 to vector<64x256xf32>
    %16 = vector.broadcast %cst_10 : f32 to vector<64x256xf32>
    %17 = arith.select %14, %15, %16 : vector<64x256xi1>, vector<64x256xf32>
    %18 = math.absf %12 : vector<64x256xf32>
    %cst_11 = arith.constant 0.327591091 : f32
    %19 = vector.broadcast %cst_11 : f32 to vector<64x256xf32>
    %20 = arith.mulf %19, %18 : vector<64x256xf32>
    %cst_12 = arith.constant 1.000000e+00 : f32
    %21 = vector.broadcast %cst_12 : f32 to vector<64x256xf32>
    %22 = arith.addf %21, %20 : vector<64x256xf32>
    %cst_13 = arith.constant 1.000000e+00 : f32
    %23 = vector.broadcast %cst_13 : f32 to vector<64x256xf32>
    %24 = arith.divf %23, %22 : vector<64x256xf32>
    %cst_14 = arith.constant 1.06140542 : f32
    %25 = vector.broadcast %cst_14 : f32 to vector<64x256xf32>
    %26 = arith.mulf %25, %24 : vector<64x256xf32>
    %cst_15 = arith.constant -1.45315206 : f32
    %27 = vector.broadcast %cst_15 : f32 to vector<64x256xf32>
    %28 = arith.addf %26, %27 : vector<64x256xf32>
    %29 = arith.mulf %28, %24 : vector<64x256xf32>
    %cst_16 = arith.constant 1.42141378 : f32
    %30 = vector.broadcast %cst_16 : f32 to vector<64x256xf32>
    %31 = arith.addf %29, %30 : vector<64x256xf32>
    %32 = arith.mulf %31, %24 : vector<64x256xf32>
    %cst_17 = arith.constant -0.284496725 : f32
    %33 = vector.broadcast %cst_17 : f32 to vector<64x256xf32>
    %34 = arith.addf %32, %33 : vector<64x256xf32>
    %35 = arith.mulf %34, %24 : vector<64x256xf32>
    %cst_18 = arith.constant 0.254829586 : f32
    %36 = vector.broadcast %cst_18 : f32 to vector<64x256xf32>
    %37 = arith.addf %35, %36 : vector<64x256xf32>
    %38 = arith.mulf %37, %24 : vector<64x256xf32>
    %cst_19 = arith.constant 0.000000e+00 : f32
    %39 = vector.broadcast %cst_19 : f32 to vector<64x256xf32>
    %40 = arith.subf %39, %18 : vector<64x256xf32>
    %41 = arith.mulf %40, %18 : vector<64x256xf32>
    %42 = math.exp %41 : vector<64x256xf32>
    %43 = arith.mulf %38, %42 : vector<64x256xf32>
    %cst_20 = arith.constant 1.000000e+00 : f32
    %44 = vector.broadcast %cst_20 : f32 to vector<64x256xf32>
    %45 = arith.subf %44, %43 : vector<64x256xf32>
    %46 = arith.mulf %17, %45 : vector<64x256xf32>
    %cst_21 = arith.constant 1.000000e+00 : f32
    %47 = vector.broadcast %cst_21 : f32 to vector<64x256xf32>
    %48 = arith.addf %47, %46 : vector<64x256xf32>
    %49 = arith.mulf %10, %48 : vector<64x256xf32>
    %c0_22 = arith.constant 0 : index
    %c0_23 = arith.constant 0 : index
    %50 = vector.load %arg8[%c0_22, %c0_23] : memref<64x128xf32, #tpu.memory_space<vmem>>, vector<64x128xf32>
    %51 = arith.truncf %49 : vector<64x256xf32> to vector<64x256xbf16>
    %c0_24 = arith.constant 0 : index
    %c0_25 = arith.constant 0 : index
    %52 = vector.load %arg5[%c0_24, %c0_25] : memref<256x128xbf16, #tpu.memory_space<vmem>>, vector<256x128xbf16>
    %cst_26 = arith.constant dense<0.000000e+00> : vector<64x128xf32>
    %53 = tpu.matmul %51, %52, %cst_26 {dimension_numbers = #tpu.dot_dimension_numbers<[1], [0], [0], [1], [0, 0, 1, 1], [], []>} : vector<64x256xbf16>, vector<256x128xbf16>, vector<64x128xf32> -> vector<64x128xf32>
    %54 = arith.addf %50, %53 : vector<64x128xf32>
    %c0_27 = arith.constant 0 : index
    %c0_28 = arith.constant 0 : index
    %55 = vector.load %arg8[%c0_27, %c0_28] : memref<64x128xf32, #tpu.memory_space<vmem>>, vector<64x128xf32>
    tpu.vector_store %arg8[%c0_27, %c0_28], %54 {strides = array<i32>} : memref<64x128xf32, #tpu.memory_space<vmem>>, vector<64x128xf32>,
    %c1_i32 = arith.constant 1 : i32
    %56 = arith.cmpi eq, %arg1, %c1_i32 : i32
    %57 = arith.extui %56 : i1 to i32
    %c0_i32_29 = arith.constant 0 : i32
    %58 = arith.cmpi ne, %57, %c0_i32_29 : i32
    scf.if %58 {
      %c0_30 = arith.constant 0 : index
      %c0_31 = arith.constant 0 : index
      %59 = vector.load %arg8[%c0_30, %c0_31] : memref<64x128xf32, #tpu.memory_space<vmem>>, vector<64x128xf32>
      %c0_32 = arith.constant 0 : index
      %c0_33 = arith.constant 0 : index
      %60 = vector.load %arg7[%c0_32, %c0_33] : memref<64x128xf32, #tpu.memory_space<vmem>>, vector<64x128xf32>
      tpu.vector_store %arg7[%c0_32, %c0_33], %59 {strides = array<i32>} : memref<64x128xf32, #tpu.memory_space<vmem>>, vector<64x128xf32>,
    } else {
    }
    return
  }
  func.func @transform_0(%arg0: i32, %arg1: i32) -> (i32, i32) {
    %c0_i32 = arith.constant 0 : i32
    %c0_i32_0 = arith.constant 0 : i32
    return %arg0, %c0_i32 : i32, i32
  }
  func.func @transform_1(%arg0: i32, %arg1: i32) -> (i32, i32) {
    %c0_i32 = arith.constant 0 : i32
    %c0_i32_0 = arith.constant 0 : i32
    return %c0_i32, %arg1 : i32, i32
  }
  func.func @transform_2(%arg0: i32, %arg1: i32) -> (i32, i32) {
    %c0_i32 = arith.constant 0 : i32
    %c0_i32_0 = arith.constant 0 : i32
    return %c0_i32, %arg1 : i32, i32
  }
  func.func @transform_3(%arg0: i32, %arg1: i32) -> (i32, i32) {
    %c0_i32 = arith.constant 0 : i32
    %c0_i32_0 = arith.constant 0 : i32
    return %arg1, %c0_i32 : i32, i32
  }
  func.func @transform_4(%arg0: i32, %arg1: i32) -> (i32, i32) {
    %c0_i32 = arith.constant 0 : i32
    %c0_i32_0 = arith.constant 0 : i32
    %c0_i32_1 = arith.constant 0 : i32
    return %c0_i32, %c0_i32_0 : i32, i32
  }
  func.func @transform_5(%arg0: i32, %arg1: i32) -> (i32, i32) {
    %c0_i32 = arith.constant 0 : i32
    %c0_i32_0 = arith.constant 0 : i32
    return %arg0, %c0_i32 : i32, i32
  }
}

</mosaic_0001>

<llo_original>
// kernel: tpu_custom_call.1
$region0: #{tpu_custom_call.1}
  #allocation0 [shape = 'u32[]', space=smem, size = 0x4, offset = 0x4, fixed_abs, tag = 'smem constant byte address 0x4 - core index']
  #allocation1 [shape = 'u32[72,128]{1,0:T(1,128)}', space=vmem, size = 0x9000, scoped, tag = 'internal scratch']
  #allocation2 [shape = 'f32[64,128]{1,0:T(8,128)}', space=vmem, size = 0x8000, scoped, tag = 'scratch operand']
  %s0 = inlined_call_operand.hbm [shape: bf16[128,128], index: 0, kind: input, shape index: {}]
  %s1 = inlined_call_operand.hbm [shape: bf16[128,512], index: 1, kind: input, shape index: {}]
  %s2 = inlined_call_operand.hbm [shape: f32[1,512], index: 2, kind: input, shape index: {}]
  %s3 = inlined_call_operand.hbm [shape: bf16[512,128], index: 3, kind: input, shape index: {}]
  %s4 = inlined_call_operand.vmem [shape: f32[1,128], index: 4, kind: input, shape index: {}]
  %s5 = inlined_call_operand.hbm [shape: f32[128,128], index: 5, kind: output, shape index: {}]
  %s6 = sld [smem:[#allocation0]]
  $region77: #{tpu_custom_call.1} parent=0
    _
  %s8 = ssub.s32 1, %s6
  %s9 = scalar_select 0, %s8, %s6
  $region1: #{tpu_custom_call.1} parent=0
    #allocation3 [shape = 'u8[32768]{0}', space=vmem, size = 0x8000, scoped, tag = 'input window, operand 0']
    #allocation4 [shape = 's32[2]{0}', space=sflag, size = 0x8, scoped, tag = 'scoped memory for tpu_custom_call.1']
    #allocation5 [shape = 's32[2]{0}', space=sflag, size = 0x8, scoped, tag = 'scoped memory for tpu_custom_call.1']
    #allocation6 [shape = 'u8[131072]{0}', space=vmem, size = 0x20000, scoped, tag = 'input window, operand 1']
    #allocation7 [shape = 's32[2]{0}', space=sflag, size = 0x8, scoped, tag = 'scoped memory for tpu_custom_call.1']
    #allocation8 [shape = 'u8[2048]{0}', space=vmem, size = 0x800, scoped, tag = 'input window, operand 2']
    #allocation9 [shape = 'u8[131072]{0}', space=vmem, size = 0x20000, scoped, tag = 'input window, operand 3']
    #allocation10 [shape = 's32[2]{0}', space=sflag, size = 0x8, scoped, tag = 'scoped memory for tpu_custom_call.1']
    #allocation11 [shape = 'u8[65536]{0}', space=vmem, size = 0x10000, scoped, tag = 'output window, operand 0']
    %10 = vsyncpa [#allocation4], 0
    %s11 = scalar_lea.sflag [#allocation4], 1
    %12 = vsyncpa %s11, 0
    %13 = vsyncpa [#allocation7], 0
    %s14 = scalar_lea.sflag [#allocation7], 1
    %15 = vsyncpa %s14, 0
    %16 = vsyncpa [#allocation10], 0
    %s17 = scalar_lea.sflag [#allocation10], 1
    %18 = vsyncpa %s17, 0
    %19 = vsyncpa [#allocation5], 0
    %s20 = scalar_lea.sflag [#allocation5], 1
    %21 = vsyncpa %s20, 0
    loop: start=0, step=1, limit=6
    $region2: #{tpu_custom_call.1} parent=1 // loop_pre_header
      _
    $region3: #{tpu_custom_call.1} parent=1 // loop_header
      %s23 = sphi 0, %s27
      %p24 = scmp.ge.s32.totalorder %s23, 6
      %s30 = sphi 0, %s42
      %s31 = sphi 0, %s38
      %s32 = sphi 0, %s30
      %s33 = sphi 0, %s31
      %s34 = sphi 0, %s32
      %s35 = sphi 0, %s33
      %s45 = sphi 0, %s47
      %s48 = sphi 0, %s45
      %s49 = sphi 0, %s48
      %s65 = sphi 0, %s49
      %s71 = sphi 0, %s73
      %s74 = sphi 0, %s71
      %s75 = sphi 0, %s74
      %s91 = sphi 0, %s75
      %s97 = sphi 0, %s99
      %s100 = sphi 0, %s97
      %s101 = sphi 0, %s100
      %s117 = sphi 0, %s101
      %s123 = sphi 0, %s125
      %s126 = sphi 0, %s123
      %s127 = sphi 0, %s126
      %s143 = sphi 0, %s127
      %s147 = sphi 0, %s147
      %s149 = sphi 0, %s147
      %s150 = sphi 0, %s149
      %s164 = sphi 0, %s150
      %s170 = sphi 0, %s172
      %s173 = sphi 0, %s170
      %s174 = sphi 0, %s173
      %s190 = sphi 0, %s174
    $region4: #{tpu_custom_call.1} parent=1 // loop_header_branch
      %26 = sbr.rel (%p24) target = $region8
    $region5: #{tpu_custom_call.1} parent=1 // loop_body
      %s28 = ssub.s32 %s23, 1
      %s29 = ssub.s32 %s23, 2
      %s36 = sadd.s32 1, %s31
      %p37 = scmp.ge.s32.totalorder %s36, 2
      %s38 = scalar_select %p37, 0, %s36
      %s39 = sadd.s32 1, %s30
      %s40 = scalar_select %p37, %s39, %s30
      %p41 = scmp.ge.s32.totalorder %s40, 2
      %s42 = scalar_select %p41, 0, %s40
      %s43 = ssub.s32 %s30, %s42
      %p44 = scmp.eq.s32.totalorder %s43, 0
      %s46 = sadd.s32 %s45, 1
      %s47 = scalar_select %p44, %s45, %s46
      %p50 = pneg %p44
      %p51 = scmp.eq.s32.totalorder %s23, 3
      %p52 = por %p50, %p51
      %p53 = scmp.ne.s32.totalorder %s45, %s48
      %p54 = scmp.eq.s32.totalorder %s23, 0
      %p55 = por %p53, %p54
      %p56 = scmp.ne.s32.totalorder %s45, %s48
      %p57 = scmp.eq.s32.totalorder %s28, 3
      %p58 = por %p56, %p57
      %p59 = scmp.ne.s32.totalorder %s48, %s49
      %p60 = scmp.eq.s32.totalorder %s28, 0
      %p61 = por %p59, %p60
      %p62 = scmp.ne.s32.totalorder %s48, %s49
      %p63 = scmp.eq.s32.totalorder %s29, 3
      %p64 = por %p62, %p63
      %p66 = scmp.ne.s32.totalorder %s49, %s65
      %p67 = scmp.eq.s32.totalorder %s29, 0
      %p68 = por %p66, %p67
      %s69 = ssub.s32 %s31, %s38
      %p70 = scmp.eq.s32.totalorder %s69, 0
      %s72 = sadd.s32 %s71, 1
      %s73 = scalar_select %p70, %s71, %s72
      %p76 = pneg %p70
      %p77 = scmp.eq.s32.totalorder %s23, 3
      %p78 = por %p76, %p77
      %p79 = scmp.ne.s32.totalorder %s71, %s74
      %p80 = scmp.eq.s32.totalorder %s23, 0
      %p81 = por %p79, %p80
      %p82 = scmp.ne.s32.totalorder %s71, %s74
      %p83 = scmp.eq.s32.totalorder %s28, 3
      %p84 = por %p82, %p83
      %p85 = scmp.ne.s32.totalorder %s74, %s75
      %p86 = scmp.eq.s32.totalorder %s28, 0
      %p87 = por %p85, %p86
      %p88 = scmp.ne.s32.totalorder %s74, %s75
      %p89 = scmp.eq.s32.totalorder %s29, 3
      %p90 = por %p88, %p89
      %p92 = scmp.ne.s32.totalorder %s75, %s91
      %p93 = scmp.eq.s32.totalorder %s29, 0
      %p94 = por %p92, %p93
      %s95 = ssub.s32 %s31, %s38
      %p96 = scmp.eq.s32.totalorder %s95, 0
      %s98 = sadd.s32 %s97, 1
      %s99 = scalar_select %p96, %s97, %s98
      %p102 = pneg %p96
      %p103 = scmp.eq.s32.totalorder %s23, 3
      %p104 = por %p102, %p103
      %p105 = scmp.ne.s32.totalorder %s97, %s100
      %p106 = scmp.eq.s32.totalorder %s23, 0
      %p107 = por %p105, %p106
      %p108 = scmp.ne.s32.totalorder %s97, %s100
      %p109 = scmp.eq.s32.totalorder %s28, 3
      %p110 = por %p108, %p109
      %p111 = scmp.ne.s32.totalorder %s100, %s101
      %p112 = scmp.eq.s32.totalorder %s28, 0
      %p113 = por %p111, %p112
      %p114 = scmp.ne.s32.totalorder %s100, %s101
      %p115 = scmp.eq.s32.totalorder %s29, 3
      %p116 = por %p114, %p115
      %p118 = scmp.ne.s32.totalorder %s101, %s117
      %p119 = scmp.eq.s32.totalorder %s29, 0
      %p120 = por %p118, %p119
      %s121 = ssub.s32 %s31, %s38
      %p122 = scmp.eq.s32.totalorder %s121, 0
      %s124 = sadd.s32 %s123, 1
      %s125 = scalar_select %p122, %s123, %s124
      %p128 = pneg %p122
      %p129 = scmp.eq.s32.totalorder %s23, 3
      %p130 = por %p128, %p129
      %p131 = scmp.ne.s32.totalorder %s123, %s126
      %p132 = scmp.eq.s32.totalorder %s23, 0
      %p133 = por %p131, %p132
      %p134 = scmp.ne.s32.totalorder %s123, %s126
      %p135 = scmp.eq.s32.totalorder %s28, 3
      %p136 = por %p134, %p135
      %p137 = scmp.ne.s32.totalorder %s126, %s127
      %p138 = scmp.eq.s32.totalorder %s28, 0
      %p139 = por %p137, %p138
      %p140 = scmp.ne.s32.totalorder %s126, %s127
      %p141 = scmp.eq.s32.totalorder %s29, 3
      %p142 = por %p140, %p141
      %p144 = scmp.ne.s32.totalorder %s127, %s143
      %p145 = scmp.eq.s32.totalorder %s29, 0
      %p146 = por %p144, %p145
      %s148 = sadd.s32 %s147, 1
      %p151 = scmp.eq.s32.totalorder %s23, 3
      %p152 = scmp.ne.s32.totalorder %s147, %s149
      %p153 = scmp.eq.s32.totalorder %s23, 0
      %p154 = por %p152, %p153
      %p155 = scmp.ne.s32.totalorder %s147, %s149
      %p156 = scmp.eq.s32.totalorder %s28, 3
      %p157 = por %p155, %p156
      %p158 = scmp.ne.s32.totalorder %s149, %s150
      %p159 = scmp.eq.s32.totalorder %s28, 0
      %p160 = por %p158, %p159
      %p161 = scmp.ne.s32.totalorder %s149, %s150
      %p162 = scmp.eq.s32.totalorder %s29, 3
      %p163 = por %p161, %p162
      %p165 = scmp.ne.s32.totalorder %s150, %s164
      %p166 = scmp.eq.s32.totalorder %s29, 0
      %p167 = por %p165, %p166
      %s168 = ssub.s32 %s30, %s42
      %p169 = scmp.eq.s32.totalorder %s168, 0
      %s171 = sadd.s32 %s170, 1
      %s172 = scalar_select %p169, %s170, %s171
      %p175 = pneg %p169
      %p176 = scmp.eq.s32.totalorder %s23, 3
      %p177 = por %p175, %p176
      %p178 = scmp.ne.s32.totalorder %s170, %s173
      %p179 = scmp.eq.s32.totalorder %s23, 0
      %p180 = por %p178, %p179
      %p181 = scmp.ne.s32.totalorder %s170, %s173
      %p182 = scmp.eq.s32.totalorder %s28, 3
      %p183 = por %p181, %p182
      %p184 = scmp.ne.s32.totalorder %s173, %s174
      %p185 = scmp.eq.s32.totalorder %s28, 0
      %p186 = por %p184, %p185
      %p187 = scmp.ne.s32.totalorder %s173, %s174
      %p188 = scmp.eq.s32.totalorder %s29, 3
      %p189 = por %p187, %p188
      %p191 = scmp.ne.s32.totalorder %s174, %s190
      %p192 = scmp.eq.s32.totalorder %s29, 0
      %p193 = por %p191, %p192
      %p194 = scmp.le.s32.totalorder 1, %s23
      %p195 = scmp.lt.s32.totalorder %s23, 5
      %p196 = pnand %p194, %p195
      %p197 = pneg %p196
      // Predicated region
      $region9: #{tpu_custom_call.1} parent=5 // pred_check
        _
      $region10: #{tpu_custom_call.1} parent=5 // pred_check_branch
        %199 = sbr.rel (%p196) target = $region12
      $region11: #{tpu_custom_call.1} parent=5 // pred_region
        %s200 = ssub.s32 %s23, 1
        // Predicated region
        $region13: #{tpu_custom_call.1} parent=11 // pred_check
          %p201 = pneg %p160
        $region14: #{tpu_custom_call.1} parent=11 // pred_check_branch
          %203 = sbr.rel (%p201) target = $region16
        $region15: #{tpu_custom_call.1} parent=11 // pred_region
          _
        $region16: #{tpu_custom_call.1} parent=11 // pred_fallthru
          _
      $region12: #{tpu_custom_call.1} parent=5 // pred_fallthru
        _
      %p204 = scmp.lt.s32.totalorder %s23, 4
      // Predicated region
      $region17: #{tpu_custom_call.1} parent=5 // pred_check
        %p205 = pneg %p204
      $region18: #{tpu_custom_call.1} parent=5 // pred_check_branch
        %207 = sbr.rel (%p205) target = $region20
      $region19: #{tpu_custom_call.1} parent=5 // pred_region
        // Predicated region
        $region21: #{tpu_custom_call.1} parent=19 // pred_check
          %p208 = pneg %p55
        $region22: #{tpu_custom_call.1} parent=19 // pred_check_branch
          %210 = sbr.rel (%p208) target = $region24
        $region23: #{tpu_custom_call.1} parent=19 // pred_region
          %s211 = sand.u32 %s45, 1
          %s212 = scalar_lea.sflag [#allocation4], %s211
          %s213 = sand.u32 %s45, 1
          %s214 = smul.addr %s213, 32
          %s215 = scalar_lea.vmem [#allocation3], %s214
          %s216 = smul.u32 8, %s30
          %218 = vsyncadd %s212, 0
          %s219 = smul.addr %s216, 4
          %s220 = scalar_lea.hbm %s0, %s219
          %s221 = sshll.u32 %s220, 4
          %s222 = int_to_ptr.hbm [resolvable:$true] %s221
          %s223 = sshll.u32 %s215, 4
          %s224 = int_to_ptr.vmem [resolvable:$true] %s223
          %229 = dma.hbm_to_vmem [thread:$0]  %s222, 512, %s224, %s212, 64, 64, 4
        $region24: #{tpu_custom_call.1} parent=19 // pred_fallthru
          _
        // Predicated region
        $region25: #{tpu_custom_call.1} parent=19 // pred_check
          %p230 = pneg %p81
        $region26: #{tpu_custom_call.1} parent=19 // pred_check_branch
          %232 = sbr.rel (%p230) target = $region28
        $region27: #{tpu_custom_call.1} parent=19 // pred_region
          %s233 = sand.u32 %s23, 1
          %s234 = scalar_lea.sflag [#allocation7], %s233
          %s235 = sand.u32 %s71, 1
          %s236 = smul.addr %s235, 128
          %s237 = scalar_lea.vmem [#allocation6], %s236
          %s238 = smul.u32 2, %s31
          %240 = vsyncadd %s234, 0
          %s241 = smul.addr %s238, 4
          %s242 = scalar_lea.hbm %s1, %s241
          %s243 = sshll.u32 %s242, 4
          %s244 = int_to_ptr.hbm [resolvable:$true] %s243
          %s245 = sshll.u32 %s237, 4
          %s246 = int_to_ptr.vmem [resolvable:$true] %s245
          %251 = dma.hbm_to_vmem [thread:$0]  %s244, 2048, %s246, %s234, 256, 128, 8
        $region28: #{tpu_custom_call.1} parent=19 // pred_fallthru
          _
        // Predicated region
        $region29: #{tpu_custom_call.1} parent=19 // pred_check
          %p252 = pneg %p107
        $region30: #{tpu_custom_call.1} parent=19 // pred_check_branch
          %254 = sbr.rel (%p252) target = $region32
        $region31: #{tpu_custom_call.1} parent=19 // pred_region
          %s255 = sand.u32 %s23, 1
          %s256 = scalar_lea.sflag [#allocation7], %s255
          %s257 = sand.u32 %s97, 1
          %s258 = smul.addr %s257, 2
          %s259 = scalar_lea.vmem [#allocation8], %s258
          %s260 = smul.u32 2, %s31
          %262 = vsyncadd %s256, 0
          %s263 = scalar_lea.hbm %s2, %s260
          %s265 = sshll.u32 %s263, 4
          %s266 = int_to_ptr.hbm [resolvable:$true] %s265
          %s267 = sshll.u32 %s259, 4
          %s268 = int_to_ptr.vmem [resolvable:$true] %s267
          %270 = dma.hbm_to_vmem [thread:$0]  %s266, 32, %s268, %s256
        $region32: #{tpu_custom_call.1} parent=19 // pred_fallthru
          _
        // Predicated region
        $region33: #{tpu_custom_call.1} parent=19 // pred_check
          %p271 = pneg %p133
        $region34: #{tpu_custom_call.1} parent=19 // pred_check_branch
          %273 = sbr.rel (%p271) target = $region36
        $region35: #{tpu_custom_call.1} parent=19 // pred_region
          %s274 = sand.u32 %s123, 1
          %s275 = scalar_lea.sflag [#allocation10], %s274
          %s276 = sand.u32 %s123, 1
          %s277 = smul.addr %s276, 128
          %s278 = scalar_lea.vmem [#allocation9], %s277
          %s279 = smul.u32 32, %s31
          %281 = vsyncadd %s275, 0
          %s282 = smul.addr %s279, 4
          %s283 = scalar_lea.hbm %s3, %s282
          %s284 = sshll.u32 %s283, 4
          %s285 = int_to_ptr.hbm [resolvable:$true] %s284
          %s286 = sshll.u32 %s278, 4
          %s287 = int_to_ptr.vmem [resolvable:$true] %s286
          %292 = dma.hbm_to_vmem [thread:$0]  %s285, 2048, %s287, %s275, 64, 64, 4
        $region36: #{tpu_custom_call.1} parent=19 // pred_fallthru
          _
      $region20: #{tpu_custom_call.1} parent=5 // pred_fallthru
        _
      %p293 = scmp.le.s32.totalorder 1, %s23
      %p294 = scmp.lt.s32.totalorder %s23, 5
      %p295 = pnand %p293, %p294
      %p296 = pneg %p295
      // Predicated region
      $region37: #{tpu_custom_call.1} parent=5 // pred_check
        _
      $region38: #{tpu_custom_call.1} parent=5 // pred_check_branch
        %298 = sbr.rel (%p295) target = $region40
      $region39: #{tpu_custom_call.1} parent=5 // pred_region
        %s299 = ssub.s32 %s23, 1
        %s300 = sand.u32 %s48, 1
        %s301 = scalar_lea.sflag [#allocation4], %s300
        %s302 = sand.u32 %s48, 1
        %s303 = smul.addr %s302, 32
        %s304 = scalar_lea.vmem [#allocation3], %s303
        // Predicated region
        $region41: #{tpu_custom_call.1} parent=39 // pred_check
          %p305 = pneg %p61
        $region42: #{tpu_custom_call.1} parent=39 // pred_check_branch
          %307 = sbr.rel (%p305) target = $region44
        $region43: #{tpu_custom_call.1} parent=39 // pred_region
          %309 = dma.done %s301, 512
        $region44: #{tpu_custom_call.1} parent=39 // pred_fallthru
          _
        %s310 = sand.u32 %s28, 1
        %s311 = scalar_lea.sflag [#allocation7], %s310
        %s312 = sand.u32 %s74, 1
        %s313 = smul.addr %s312, 128
        %s314 = scalar_lea.vmem [#allocation6], %s313
        // Predicated region
        $region45: #{tpu_custom_call.1} parent=39 // pred_check
          %p315 = pneg %p87
        $region46: #{tpu_custom_call.1} parent=39 // pred_check_branch
          %317 = sbr.rel (%p315) target = $region48
        $region47: #{tpu_custom_call.1} parent=39 // pred_region
          %319 = dma.done %s311, 2048
        $region48: #{tpu_custom_call.1} parent=39 // pred_fallthru
          _
        %s320 = sand.u32 %s28, 1
        %s321 = scalar_lea.sflag [#allocation7], %s320
        %s322 = sand.u32 %s100, 1
        %s323 = smul.addr %s322, 2
        %s324 = scalar_lea.vmem [#allocation8], %s323
        // Predicated region
        $region49: #{tpu_custom_call.1} parent=39 // pred_check
          %p325 = pneg %p113
        $region50: #{tpu_custom_call.1} parent=39 // pred_check_branch
          %327 = sbr.rel (%p325) target = $region52
        $region51: #{tpu_custom_call.1} parent=39 // pred_region
          %329 = dma.done %s321, 32
        $region52: #{tpu_custom_call.1} parent=39 // pred_fallthru
          _
        %s330 = sand.u32 %s126, 1
        %s331 = scalar_lea.sflag [#allocation10], %s330
        %s332 = sand.u32 %s126, 1
        %s333 = smul.addr %s332, 128
        %s334 = scalar_lea.vmem [#allocation9], %s333
        // Predicated region
        $region53: #{tpu_custom_call.1} parent=39 // pred_check
          %p335 = pneg %p139
        $region54: #{tpu_custom_call.1} parent=39 // pred_check_branch
          %337 = sbr.rel (%p335) target = $region56
        $region55: #{tpu_custom_call.1} parent=39 // pred_region
          %339 = dma.done %s331, 2048
        $region56: #{tpu_custom_call.1} parent=39 // pred_fallthru
          _
        %s340 = sand.u32 %s48, 1
        %s341 = scalar_lea.sflag [#allocation4], %s340
        %s342 = sand.u32 %s48, 1
        %s343 = smul.addr %s342, 32
        %s344 = scalar_lea.vmem [#allocation3], %s343
        %p345 = pneg %p61
        %p346 = pneg %p58
        %s347 = sand.u32 %s28, 1
        %s348 = scalar_lea.sflag [#allocation7], %s347
        %s349 = sand.u32 %s74, 1
        %s350 = smul.addr %s349, 128
        %s351 = scalar_lea.vmem [#allocation6], %s350
        %p352 = pneg %p87
        %p353 = pneg %p84
        %s354 = sand.u32 %s28, 1
        %s355 = scalar_lea.sflag [#allocation7], %s354
        %s356 = sand.u32 %s100, 1
        %s357 = smul.addr %s356, 2
        %s358 = scalar_lea.vmem [#allocation8], %s357
        %p359 = pneg %p113
        %p360 = pneg %p110
        %s361 = sand.u32 %s126, 1
        %s362 = scalar_lea.sflag [#allocation10], %s361
        %s363 = sand.u32 %s126, 1
        %s364 = smul.addr %s363, 128
        %s365 = scalar_lea.vmem [#allocation9], %s364
        %p366 = pneg %p139
        %p367 = pneg %p136
        %p368 = pneg %p160
        %p369 = pneg %p157
        %p370 = pneg %p186
        %p371 = pneg %p183
        %s372 = sand.u32 %s173, 1
        %s373 = scalar_lea.sflag [#allocation5], %s372
        %s374 = sand.u32 %s173, 1
        %s375 = smul.addr %s374, 64
        %s376 = scalar_lea.vmem [#allocation11], %s375
        %s377 = smul.u32 8, %s32
        %s378 = smul.u32 2, %s33
        %s379 = smul.u32 2, %s33
        %s380 = smul.u32 32, %s33
        %s381 = smul.u32 8, %s32
        %p382 = scmp.eq.s32.totalorder %s33, 0
        // Predicated region
        $region57: #{tpu_custom_call.1} parent=39 // pred_check
          %p383 = pneg %p382
        $region58: #{tpu_custom_call.1} parent=39 // pred_check_branch
          %385 = sbr.rel (%p383) target = $region60
        $region59: #{tpu_custom_call.1} parent=39 // pred_region
          %v386 = vld [vmem:[%s4] sm:$0x1]
          %v388 = vperm.slane %v386, 0
          %v390 = vadd.f32 %v388, 0.0
          %391 = vst [vmem:[#allocation2] sm:$0xff] %v390
          %392 = vst [vmem:[#allocation2 + $0x8] sm:$0xff] %v390
          %393 = vst [vmem:[#allocation2 + $0x10] sm:$0xff] %v390
          %394 = vst [vmem:[#allocation2 + $0x18] sm:$0xff] %v390
          %395 = vst [vmem:[#allocation2 + $0x20] sm:$0xff] %v390
          %396 = vst [vmem:[#allocation2 + $0x28] sm:$0xff] %v390
          %397 = vst [vmem:[#allocation2 + $0x30] sm:$0xff] %v390
          %398 = vst [vmem:[#allocation2 + $0x38] sm:$0xff] %v390
        $region60: #{tpu_custom_call.1} parent=39 // pred_fallthru
          _
        %v399 = vld [vmem:[%s304] sm:$0xf]
        %v400 = vld [vmem:[%s304 + $0x4] sm:$0xf]
        %v401 = vld [vmem:[%s304 + $0x8] sm:$0xf]
        %v402 = vld [vmem:[%s304 + $0xc] sm:$0xf]
        %v403 = vld [vmem:[%s304 + $0x10] sm:$0xf]
        %v404 = vld [vmem:[%s304 + $0x14] sm:$0xf]
        %v405 = vld [vmem:[%s304 + $0x18] sm:$0xf]
        %v406 = vld [vmem:[%s304 + $0x1c] sm:$0xf]
        %v407 = vld [vmem:[%s314] sm:$0xff]
        %v408 = vld [vmem:[%s314 + $0x8] sm:$0xff]
        %v409 = vld [vmem:[%s314 + $0x10] sm:$0xff]
        %v410 = vld [vmem:[%s314 + $0x18] sm:$0xff]
        %v411 = vld [vmem:[%s314 + $0x20] sm:$0xff]
        %v412 = vld [vmem:[%s314 + $0x28] sm:$0xff]
        %v413 = vld [vmem:[%s314 + $0x30] sm:$0xff]
        %v414 = vld [vmem:[%s314 + $0x38] sm:$0xff]
        %v415 = vld [vmem:[%s314 + $0x40] sm:$0xff]
        %v416 = vld [vmem:[%s314 + $0x48] sm:$0xff]
        %v417 = vld [vmem:[%s314 + $0x50] sm:$0xff]
        %v418 = vld [vmem:[%s314 + $0x58] sm:$0xff]
        %v419 = vld [vmem:[%s314 + $0x60] sm:$0xff]
        %v420 = vld [vmem:[%s314 + $0x68] sm:$0xff]
        %v421 = vld [vmem:[%s314 + $0x70] sm:$0xff]
        %v422 = vld [vmem:[%s314 + $0x78] sm:$0xff]
        %v423 = vld [vmem:[%s324] sm:$0x3]
        %v425 = vperm.slane %v423, 0
        %v426 = vperm.slane %v423, 1
        %v437 = vunpack.c.l.b16 %v399
        %v438 = vunpack.c.l.b16 %v400
        %v439 = vunpack.c.l.b16 %v401
        %v440 = vunpack.c.l.b16 %v402
        %v441 = vunpack.c.l.b16 %v403
        %v442 = vunpack.c.l.b16 %v404
        %v443 = vunpack.c.l.b16 %v405
        %v444 = vunpack.c.l.b16 %v406
        %v445 = vpack.c.b16 %v438, %v437
        %v446 = vpack.c.b16 %v440, %v439
        %v447 = vpack.c.b16 %v442, %v441
        %v448 = vpack.c.b16 %v444, %v443
        %v469 = vunpack.c.l.b16 %v407
        %v470 = vunpack.c.h.b16 %v407
        %v471 = vunpack.c.l.b16 %v408
        %v472 = vunpack.c.h.b16 %v408
        %v473 = vunpack.c.l.b16 %v409
        %v474 = vunpack.c.h.b16 %v409
        %v475 = vunpack.c.l.b16 %v410
        %v476 = vunpack.c.h.b16 %v410
        %v477 = vunpack.c.l.b16 %v411
        %v478 = vunpack.c.h.b16 %v411
        %v479 = vunpack.c.l.b16 %v412
        %v480 = vunpack.c.h.b16 %v412
        %v481 = vunpack.c.l.b16 %v413
        %v482 = vunpack.c.h.b16 %v413
        %v483 = vunpack.c.l.b16 %v414
        %v484 = vunpack.c.h.b16 %v414
        %v485 = vunpack.c.l.b16 %v415
        %v486 = vunpack.c.h.b16 %v415
        %v487 = vunpack.c.l.b16 %v416
        %v488 = vunpack.c.h.b16 %v416
        %v489 = vunpack.c.l.b16 %v417
        %v490 = vunpack.c.h.b16 %v417
        %v491 = vunpack.c.l.b16 %v418
        %v492 = vunpack.c.h.b16 %v418
        %v493 = vunpack.c.l.b16 %v419
        %v494 = vunpack.c.h.b16 %v419
        %v495 = vunpack.c.l.b16 %v420
        %v496 = vunpack.c.h.b16 %v420
        %v497 = vunpack.c.l.b16 %v421
        %v498 = vunpack.c.h.b16 %v421
        %v499 = vunpack.c.l.b16 %v422
        %v500 = vunpack.c.h.b16 %v422
        %v501 = vpack.c.b16 %v471, %v469
        %v502 = vpack.c.b16 %v472, %v470
        %v503 = vpack.c.b16 %v475, %v473
        %v504 = vpack.c.b16 %v476, %v474
        %v505 = vpack.c.b16 %v479, %v477
        %v506 = vpack.c.b16 %v480, %v478
        %v507 = vpack.c.b16 %v483, %v481
        %v508 = vpack.c.b16 %v484, %v482
        %v509 = vpack.c.b16 %v487, %v485
        %v510 = vpack.c.b16 %v488, %v486
        %v511 = vpack.c.b16 %v491, %v489
        %v512 = vpack.c.b16 %v492, %v490
        %v513 = vpack.c.b16 %v495, %v493
        %v514 = vpack.c.b16 %v496, %v494
        %v515 = vpack.c.b16 %v499, %v497
        %v516 = vpack.c.b16 %v500, %v498
        %533 = vmatpush.bf16.msra.mxu0 %v515
        %534 = vmatpush.bf16.msra.mxu0 %v513
        %535 = vmatpush.bf16.msra.mxu0 %v511
        %536 = vmatpush.bf16.msra.mxu0 %v509
        %537 = vmatpush.bf16.msra.mxu0 %v507
        %538 = vmatpush.bf16.msra.mxu0 %v505
        %539 = vmatpush.bf16.msra.mxu0 %v503
        %540 = vmatpush.bf16.msra.mxu0 %v501
        %541 = vmatmul.bf16.gmra.mxu0 %v445
        %v542 = vpop.f32.mrf.mxu0
        %v543 = vadd.f32 %v425, %v542
        %v544 = vpop.f32.mrf.mxu0
        %v545 = vadd.f32 %v425, %v544
        %546 = vmatmul.bf16.gmra.mxu0 %v446
        %v547 = vpop.f32.mrf.mxu0
        %v548 = vadd.f32 %v425, %v547
        %v549 = vpop.f32.mrf.mxu0
        %v550 = vadd.f32 %v425, %v549
        %551 = vmatmul.bf16.gmra.mxu0 %v447
        %v552 = vpop.f32.mrf.mxu0
        %v553 = vadd.f32 %v425, %v552
        %v554 = vpop.f32.mrf.mxu0
        %v555 = vadd.f32 %v425, %v554
        %556 = vmatmul.bf16.gmra.mxu0 %v448
        %v557 = vpop.f32.mrf.mxu0
        %v558 = vadd.f32 %v425, %v557
        %v559 = vpop.f32.mrf.mxu0
        %v560 = vadd.f32 %v425, %v559
        %561 = vdwg.mxu0
        %562 = vmatpush.bf16.msra.mxu0 %v516
        %563 = vmatpush.bf16.msra.mxu0 %v514
        %564 = vmatpush.bf16.msra.mxu0 %v512
        %565 = vmatpush.bf16.msra.mxu0 %v510
        %566 = vmatpush.bf16.msra.mxu0 %v508
        %567 = vmatpush.bf16.msra.mxu0 %v506
        %568 = vmatpush.bf16.msra.mxu0 %v504
        %569 = vmatpush.bf16.msra.mxu0 %v502
        %570 = vmatmul.bf16.gmra.mxu0 %v445
        %v571 = vpop.f32.mrf.mxu0
        %v572 = vadd.f32 %v426, %v571
        %v573 = vpop.f32.mrf.mxu0
        %v574 = vadd.f32 %v426, %v573
        %575 = vmatmul.bf16.gmra.mxu0 %v446
        %v576 = vpop.f32.mrf.mxu0
        %v577 = vadd.f32 %v426, %v576
        %v578 = vpop.f32.mrf.mxu0
        %v579 = vadd.f32 %v426, %v578
        %580 = vmatmul.bf16.gmra.mxu0 %v447
        %v581 = vpop.f32.mrf.mxu0
        %v582 = vadd.f32 %v426, %v581
        %v583 = vpop.f32.mrf.mxu0
        %v584 = vadd.f32 %v426, %v583
        %585 = vmatmul.bf16.gmra.mxu0 %v448
        %v586 = vpop.f32.mrf.mxu0
        %v587 = vadd.f32 %v426, %v586
        %v588 = vpop.f32.mrf.mxu0
        %v589 = vadd.f32 %v426, %v588
        %590 = vdwg.mxu0
        %v591 = vmul.f32 %v543, 0.5
        %v592 = vmul.f32 %v572, 0.5
        %v593 = vmul.f32 %v545, 0.5
        %v594 = vmul.f32 %v574, 0.5
        %v595 = vmul.f32 %v548, 0.5
        %v596 = vmul.f32 %v577, 0.5
        %v597 = vmul.f32 %v550, 0.5
        %v598 = vmul.f32 %v579, 0.5
        %v599 = vmul.f32 %v553, 0.5
        %v600 = vmul.f32 %v582, 0.5
        %v601 = vmul.f32 %v555, 0.5
        %v602 = vmul.f32 %v584, 0.5
        %v603 = vmul.f32 %v558, 0.5
        %v604 = vmul.f32 %v587, 0.5
        %v605 = vmul.f32 %v560, 0.5
        %v606 = vmul.f32 %v589, 0.5
        %v607 = vmul.f32 %v543, 0.70710677
        %v608 = vmul.f32 %v572, 0.70710677
        %v609 = vmul.f32 %v545, 0.70710677
        %v610 = vmul.f32 %v574, 0.70710677
        %v611 = vmul.f32 %v548, 0.70710677
        %v612 = vmul.f32 %v577, 0.70710677
        %v613 = vmul.f32 %v550, 0.70710677
        %v614 = vmul.f32 %v579, 0.70710677
        %v615 = vmul.f32 %v553, 0.70710677
        %v616 = vmul.f32 %v582, 0.70710677
        %v617 = vmul.f32 %v555, 0.70710677
        %v618 = vmul.f32 %v584, 0.70710677
        %v619 = vmul.f32 %v558, 0.70710677
        %v620 = vmul.f32 %v587, 0.70710677
        %v621 = vmul.f32 %v560, 0.70710677
        %v622 = vmul.f32 %v589, 0.70710677
        %vm623 = vcmp.ge.f32.partialorder %v607, 0.0
        %vm624 = vcmp.ge.f32.partialorder %v608, 0.0
        %vm625 = vcmp.ge.f32.partialorder %v609, 0.0
        %vm626 = vcmp.ge.f32.partialorder %v610, 0.0
        %vm627 = vcmp.ge.f32.partialorder %v611, 0.0
        %vm628 = vcmp.ge.f32.partialorder %v612, 0.0
        %vm629 = vcmp.ge.f32.partialorder %v613, 0.0
        %vm630 = vcmp.ge.f32.partialorder %v614, 0.0
        %vm631 = vcmp.ge.f32.partialorder %v615, 0.0
        %vm632 = vcmp.ge.f32.partialorder %v616, 0.0
        %vm633 = vcmp.ge.f32.partialorder %v617, 0.0
        %vm634 = vcmp.ge.f32.partialorder %v618, 0.0
        %vm635 = vcmp.ge.f32.partialorder %v619, 0.0
        %vm636 = vcmp.ge.f32.partialorder %v620, 0.0
        %vm637 = vcmp.ge.f32.partialorder %v621, 0.0
        %vm638 = vcmp.ge.f32.partialorder %v622, 0.0
        %v639 = vsel %vm623, 1.0, -1.0
        %v640 = vsel %vm624, 1.0, -1.0
        %v641 = vsel %vm625, 1.0, -1.0
        %v642 = vsel %vm626, 1.0, -1.0
        %v643 = vsel %vm627, 1.0, -1.0
        %v644 = vsel %vm628, 1.0, -1.0
        %v645 = vsel %vm629, 1.0, -1.0
        %v646 = vsel %vm630, 1.0, -1.0
        %v647 = vsel %vm631, 1.0, -1.0
        %v648 = vsel %vm632, 1.0, -1.0
        %v649 = vsel %vm633, 1.0, -1.0
        %v650 = vsel %vm634, 1.0, -1.0
        %v651 = vsel %vm635, 1.0, -1.0
        %v652 = vsel %vm636, 1.0, -1.0
        %v653 = vsel %vm637, 1.0, -1.0
        %v654 = vsel %vm638, 1.0, -1.0
        %v655 = vand.u32 2147483647, %v607
        %v656 = vand.u32 2147483647, %v608
        %v657 = vand.u32 2147483647, %v609
        %v658 = vand.u32 2147483647, %v610
        %v659 = vand.u32 2147483647, %v611
        %v660 = vand.u32 2147483647, %v612
        %v661 = vand.u32 2147483647, %v613
        %v662 = vand.u32 2147483647, %v614
        %v663 = vand.u32 2147483647, %v615
        %v664 = vand.u32 2147483647, %v616
        %v665 = vand.u32 2147483647, %v617
        %v666 = vand.u32 2147483647, %v618
        %v667 = vand.u32 2147483647, %v619
        %v668 = vand.u32 2147483647, %v620
        %v669 = vand.u32 2147483647, %v621
        %v670 = vand.u32 2147483647, %v622
        %v671 = vmul.f32 %v655, 0.3275911
        %v672 = vmul.f32 %v656, 0.3275911
        %v673 = vmul.f32 %v657, 0.3275911
        %v674 = vmul.f32 %v658, 0.3275911
        %v675 = vmul.f32 %v659, 0.3275911
        %v676 = vmul.f32 %v660, 0.3275911
        %v677 = vmul.f32 %v661, 0.3275911
        %v678 = vmul.f32 %v662, 0.3275911
        %v679 = vmul.f32 %v663, 0.3275911
        %v680 = vmul.f32 %v664, 0.3275911
        %v681 = vmul.f32 %v665, 0.3275911
        %v682 = vmul.f32 %v666, 0.3275911
        %v683 = vmul.f32 %v667, 0.3275911
        %v684 = vmul.f32 %v668, 0.3275911
        %v685 = vmul.f32 %v669, 0.3275911
        %v686 = vmul.f32 %v670, 0.3275911
        %v687 = vadd.f32 %v671, 1.0
        %v688 = vadd.f32 %v672, 1.0
        %v689 = vadd.f32 %v673, 1.0
        %v690 = vadd.f32 %v674, 1.0
        %v691 = vadd.f32 %v675, 1.0
        %v692 = vadd.f32 %v676, 1.0
        %v693 = vadd.f32 %v677, 1.0
        %v694 = vadd.f32 %v678, 1.0
        %v695 = vadd.f32 %v679, 1.0
        %v696 = vadd.f32 %v680, 1.0
        %v697 = vadd.f32 %v681, 1.0
        %v698 = vadd.f32 %v682, 1.0
        %v699 = vadd.f32 %v683, 1.0
        %v700 = vadd.f32 %v684, 1.0
        %v701 = vadd.f32 %v685, 1.0
        %v702 = vadd.f32 %v686, 1.0
        %v703 = vrcp.pop %v687
        %v704 = vmul.f32 %v687, %v703
        %v705 = vsub.f32 1.0, %v704
        %v706 = vmul.f32 %v703, %v705
        %v707 = vadd.f32 %v703, %v706
        %vm708 = vweird.f32 %v687
        %vm709 = vweird.f32 %v703
        %vm710 = vmor %vm708, %vm709
        %v711 = vsel %vm710, %v703, %v707
        %v712 = vand.u32 2147483647, %v687
        %vm713 = vcmp.eq.f32.partialorder %v712, 8.507059e+37
        %v714 = vand.u32 %v687, 2147483648
        %v715 = vor.u32 1.1754944e-38, %v714
        %v716 = vsel %vm713, %v715, %v711
        %v717 = vmul.f32 1.0, %v716
        %v718 = vrcp.pop %v688
        %v719 = vmul.f32 %v688, %v718
        %v720 = vsub.f32 1.0, %v719
        %v721 = vmul.f32 %v718, %v720
        %v722 = vadd.f32 %v718, %v721
        %vm723 = vweird.f32 %v688
        %vm724 = vweird.f32 %v718
        %vm725 = vmor %vm723, %vm724
        %v726 = vsel %vm725, %v718, %v722
        %v727 = vand.u32 2147483647, %v688
        %vm728 = vcmp.eq.f32.partialorder %v727, 8.507059e+37
        %v729 = vand.u32 %v688, 2147483648
        %v730 = vor.u32 1.1754944e-38, %v729
        %v731 = vsel %vm728, %v730, %v726
        %v732 = vmul.f32 1.0, %v731
        %v733 = vrcp.pop %v689
        %v734 = vmul.f32 %v689, %v733
        %v735 = vsub.f32 1.0, %v734
        %v736 = vmul.f32 %v733, %v735
        %v737 = vadd.f32 %v733, %v736
        %vm738 = vweird.f32 %v689
        %vm739 = vweird.f32 %v733
        %vm740 = vmor %vm738, %vm739
        %v741 = vsel %vm740, %v733, %v737
        %v742 = vand.u32 2147483647, %v689
        %vm743 = vcmp.eq.f32.partialorder %v742, 8.507059e+37
        %v744 = vand.u32 %v689, 2147483648
        %v745 = vor.u32 1.1754944e-38, %v744
        %v746 = vsel %vm743, %v745, %v741
        %v747 = vmul.f32 1.0, %v746
        %v748 = vrcp.pop %v690
        %v749 = vmul.f32 %v690, %v748
        %v750 = vsub.f32 1.0, %v749
        %v751 = vmul.f32 %v748, %v750
        %v752 = vadd.f32 %v748, %v751
        %vm753 = vweird.f32 %v690
        %vm754 = vweird.f32 %v748
        %vm755 = vmor %vm753, %vm754
        %v756 = vsel %vm755, %v748, %v752
        %v757 = vand.u32 2147483647, %v690
        %vm758 = vcmp.eq.f32.partialorder %v757, 8.507059e+37
        %v759 = vand.u32 %v690, 2147483648
        %v760 = vor.u32 1.1754944e-38, %v759
        %v761 = vsel %vm758, %v760, %v756
        %v762 = vmul.f32 1.0, %v761
        %v763 = vrcp.pop %v691
        %v764 = vmul.f32 %v691, %v763
        %v765 = vsub.f32 1.0, %v764
        %v766 = vmul.f32 %v763, %v765
        %v767 = vadd.f32 %v763, %v766
        %vm768 = vweird.f32 %v691
        %vm769 = vweird.f32 %v763
        %vm770 = vmor %vm768, %vm769
        %v771 = vsel %vm770, %v763, %v767
        %v772 = vand.u32 2147483647, %v691
        %vm773 = vcmp.eq.f32.partialorder %v772, 8.507059e+37
        %v774 = vand.u32 %v691, 2147483648
        %v775 = vor.u32 1.1754944e-38, %v774
        %v776 = vsel %vm773, %v775, %v771
        %v777 = vmul.f32 1.0, %v776
        %v778 = vrcp.pop %v692
        %v779 = vmul.f32 %v692, %v778
        %v780 = vsub.f32 1.0, %v779
        %v781 = vmul.f32 %v778, %v780
        %v782 = vadd.f32 %v778, %v781
        %vm783 = vweird.f32 %v692
        %vm784 = vweird.f32 %v778
        %vm785 = vmor %vm783, %vm784
        %v786 = vsel %vm785, %v778, %v782
        %v787 = vand.u32 2147483647, %v692
        %vm788 = vcmp.eq.f32.partialorder %v787, 8.507059e+37
        %v789 = vand.u32 %v692, 2147483648
        %v790 = vor.u32 1.1754944e-38, %v789
        %v791 = vsel %vm788, %v790, %v786
        %v792 = vmul.f32 1.0, %v791
        %v793 = vrcp.pop %v693
        %v794 = vmul.f32 %v693, %v793
        %v795 = vsub.f32 1.0, %v794
        %v796 = vmul.f32 %v793, %v795
        %v797 = vadd.f32 %v793, %v796
        %vm798 = vweird.f32 %v693
        %vm799 = vweird.f32 %v793
        %vm800 = vmor %vm798, %vm799
        %v801 = vsel %vm800, %v793, %v797
        %v802 = vand.u32 2147483647, %v693
        %vm803 = vcmp.eq.f32.partialorder %v802, 8.507059e+37
        %v804 = vand.u32 %v693, 2147483648
        %v805 = vor.u32 1.1754944e-38, %v804
        %v806 = vsel %vm803, %v805, %v801
        %v807 = vmul.f32 1.0, %v806
        %v808 = vrcp.pop %v694
        %v809 = vmul.f32 %v694, %v808
        %v810 = vsub.f32 1.0, %v809
        %v811 = vmul.f32 %v808, %v810
        %v812 = vadd.f32 %v808, %v811
        %vm813 = vweird.f32 %v694
        %vm814 = vweird.f32 %v808
        %vm815 = vmor %vm813, %vm814
        %v816 = vsel %vm815, %v808, %v812
        %v817 = vand.u32 2147483647, %v694
        %vm818 = vcmp.eq.f32.partialorder %v817, 8.507059e+37
        %v819 = vand.u32 %v694, 2147483648
        %v820 = vor.u32 1.1754944e-38, %v819
        %v821 = vsel %vm818, %v820, %v816
        %v822 = vmul.f32 1.0, %v821
        %v823 = vrcp.pop %v695
        %v824 = vmul.f32 %v695, %v823
        %v825 = vsub.f32 1.0, %v824
        %v826 = vmul.f32 %v823, %v825
        %v827 = vadd.f32 %v823, %v826
        %vm828 = vweird.f32 %v695
        %vm829 = vweird.f32 %v823
        %vm830 = vmor %vm828, %vm829
        %v831 = vsel %vm830, %v823, %v827
        %v832 = vand.u32 2147483647, %v695
        %vm833 = vcmp.eq.f32.partialorder %v832, 8.507059e+37
        %v834 = vand.u32 %v695, 2147483648
        %v835 = vor.u32 1.1754944e-38, %v834
        %v836 = vsel %vm833, %v835, %v831
        %v837 = vmul.f32 1.0, %v836
        %v838 = vrcp.pop %v696
        %v839 = vmul.f32 %v696, %v838
        %v840 = vsub.f32 1.0, %v839
        %v841 = vmul.f32 %v838, %v840
        %v842 = vadd.f32 %v838, %v841
        %vm843 = vweird.f32 %v696
        %vm844 = vweird.f32 %v838
        %vm845 = vmor %vm843, %vm844
        %v846 = vsel %vm845, %v838, %v842
        %v847 = vand.u32 2147483647, %v696
        %vm848 = vcmp.eq.f32.partialorder %v847, 8.507059e+37
        %v849 = vand.u32 %v696, 2147483648
        %v850 = vor.u32 1.1754944e-38, %v849
        %v851 = vsel %vm848, %v850, %v846
        %v852 = vmul.f32 1.0, %v851
        %v853 = vrcp.pop %v697
        %v854 = vmul.f32 %v697, %v853
        %v855 = vsub.f32 1.0, %v854
        %v856 = vmul.f32 %v853, %v855
        %v857 = vadd.f32 %v853, %v856
        %vm858 = vweird.f32 %v697
        %vm859 = vweird.f32 %v853
        %vm860 = vmor %vm858, %vm859
        %v861 = vsel %vm860, %v853, %v857
        %v862 = vand.u32 2147483647, %v697
        %vm863 = vcmp.eq.f32.partialorder %v862, 8.507059e+37
        %v864 = vand.u32 %v697, 2147483648
        %v865 = vor.u32 1.1754944e-38, %v864
        %v866 = vsel %vm863, %v865, %v861
        %v867 = vmul.f32 1.0, %v866
        %v868 = vrcp.pop %v698
        %v869 = vmul.f32 %v698, %v868
        %v870 = vsub.f32 1.0, %v869
        %v871 = vmul.f32 %v868, %v870
        %v872 = vadd.f32 %v868, %v871
        %vm873 = vweird.f32 %v698
        %vm874 = vweird.f32 %v868
        %vm875 = vmor %vm873, %vm874
        %v876 = vsel %vm875, %v868, %v872
        %v877 = vand.u32 2147483647, %v698
        %vm878 = vcmp.eq.f32.partialorder %v877, 8.507059e+37
        %v879 = vand.u32 %v698, 2147483648
        %v880 = vor.u32 1.1754944e-38, %v879
        %v881 = vsel %vm878, %v880, %v876
        %v882 = vmul.f32 1.0, %v881
        %v883 = vrcp.pop %v699
        %v884 = vmul.f32 %v699, %v883
        %v885 = vsub.f32 1.0, %v884
        %v886 = vmul.f32 %v883, %v885
        %v887 = vadd.f32 %v883, %v886
        %vm888 = vweird.f32 %v699
        %vm889 = vweird.f32 %v883
        %vm890 = vmor %vm888, %vm889
        %v891 = vsel %vm890, %v883, %v887
        %v892 = vand.u32 2147483647, %v699
        %vm893 = vcmp.eq.f32.partialorder %v892, 8.507059e+37
        %v894 = vand.u32 %v699, 2147483648
        %v895 = vor.u32 1.1754944e-38, %v894
        %v896 = vsel %vm893, %v895, %v891
        %v897 = vmul.f32 1.0, %v896
        %v898 = vrcp.pop %v700
        %v899 = vmul.f32 %v700, %v898
        %v900 = vsub.f32 1.0, %v899
        %v901 = vmul.f32 %v898, %v900
        %v902 = vadd.f32 %v898, %v901
        %vm903 = vweird.f32 %v700
        %vm904 = vweird.f32 %v898
        %vm905 = vmor %vm903, %vm904
        %v906 = vsel %vm905, %v898, %v902
        %v907 = vand.u32 2147483647, %v700
        %vm908 = vcmp.eq.f32.partialorder %v907, 8.507059e+37
        %v909 = vand.u32 %v700, 2147483648
        %v910 = vor.u32 1.1754944e-38, %v909
        %v911 = vsel %vm908, %v910, %v906
        %v912 = vmul.f32 1.0, %v911
        %v913 = vrcp.pop %v701
        %v914 = vmul.f32 %v701, %v913
        %v915 = vsub.f32 1.0, %v914
        %v916 = vmul.f32 %v913, %v915
        %v917 = vadd.f32 %v913, %v916
        %vm918 = vweird.f32 %v701
        %vm919 = vweird.f32 %v913
        %vm920 = vmor %vm918, %vm919
        %v921 = vsel %vm920, %v913, %v917
        %v922 = vand.u32 2147483647, %v701
        %vm923 = vcmp.eq.f32.partialorder %v922, 8.507059e+37
        %v924 = vand.u32 %v701, 2147483648
        %v925 = vor.u32 1.1754944e-38, %v924
        %v926 = vsel %vm923, %v925, %v921
        %v927 = vmul.f32 1.0, %v926
        %v928 = vrcp.pop %v702
        %v929 = vmul.f32 %v702, %v928
        %v930 = vsub.f32 1.0, %v929
        %v931 = vmul.f32 %v928, %v930
        %v932 = vadd.f32 %v928, %v931
        %vm933 = vweird.f32 %v702
        %vm934 = vweird.f32 %v928
        %vm935 = vmor %vm933, %vm934
        %v936 = vsel %vm935, %v928, %v932
        %v937 = vand.u32 2147483647, %v702
        %vm938 = vcmp.eq.f32.partialorder %v937, 8.507059e+37
        %v939 = vand.u32 %v702, 2147483648
        %v940 = vor.u32 1.1754944e-38, %v939
        %v941 = vsel %vm938, %v940, %v936
        %v942 = vmul.f32 1.0, %v941
        %v943 = vmul.f32 %v717, 1.0614054
        %v944 = vmul.f32 %v732, 1.0614054
        %v945 = vmul.f32 %v747, 1.0614054
        %v946 = vmul.f32 %v762, 1.0614054
        %v947 = vmul.f32 %v777, 1.0614054
        %v948 = vmul.f32 %v792, 1.0614054
        %v949 = vmul.f32 %v807, 1.0614054
        %v950 = vmul.f32 %v822, 1.0614054
        %v951 = vmul.f32 %v837, 1.0614054
        %v952 = vmul.f32 %v852, 1.0614054
        %v953 = vmul.f32 %v867, 1.0614054
        %v954 = vmul.f32 %v882, 1.0614054
        %v955 = vmul.f32 %v897, 1.0614054
        %v956 = vmul.f32 %v912, 1.0614054
        %v957 = vmul.f32 %v927, 1.0614054
        %v958 = vmul.f32 %v942, 1.0614054
        %v959 = vadd.f32 %v943, -1.4531521
        %v960 = vadd.f32 %v944, -1.4531521
        %v961 = vadd.f32 %v945, -1.4531521
        %v962 = vadd.f32 %v946, -1.4531521
        %v963 = vadd.f32 %v947, -1.4531521
        %v964 = vadd.f32 %v948, -1.4531521
        %v965 = vadd.f32 %v949, -1.4531521
        %v966 = vadd.f32 %v950, -1.4531521
        %v967 = vadd.f32 %v951, -1.4531521
        %v968 = vadd.f32 %v952, -1.4531521
        %v969 = vadd.f32 %v953, -1.4531521
        %v970 = vadd.f32 %v954, -1.4531521
        %v971 = vadd.f32 %v955, -1.4531521
        %v972 = vadd.f32 %v956, -1.4531521
        %v973 = vadd.f32 %v957, -1.4531521
        %v974 = vadd.f32 %v958, -1.4531521
        %v975 = vmul.f32 %v959, %v717
        %v976 = vmul.f32 %v960, %v732
        %v977 = vmul.f32 %v961, %v747
        %v978 = vmul.f32 %v962, %v762
        %v979 = vmul.f32 %v963, %v777
        %v980 = vmul.f32 %v964, %v792
        %v981 = vmul.f32 %v965, %v807
        %v982 = vmul.f32 %v966, %v822
        %v983 = vmul.f32 %v967, %v837
        %v984 = vmul.f32 %v968, %v852
        %v985 = vmul.f32 %v969, %v867
        %v986 = vmul.f32 %v970, %v882
        %v987 = vmul.f32 %v971, %v897
        %v988 = vmul.f32 %v972, %v912
        %v989 = vmul.f32 %v973, %v927
        %v990 = vmul.f32 %v974, %v942
        %v991 = vadd.f32 %v975, 1.4214138
        %v992 = vadd.f32 %v976, 1.4214138
        %v993 = vadd.f32 %v977, 1.4214138
        %v994 = vadd.f32 %v978, 1.4214138
        %v995 = vadd.f32 %v979, 1.4214138
        %v996 = vadd.f32 %v980, 1.4214138
        %v997 = vadd.f32 %v981, 1.4214138
        %v998 = vadd.f32 %v982, 1.4214138
        %v999 = vadd.f32 %v983, 1.4214138
        %v1000 = vadd.f32 %v984, 1.4214138
        %v1001 = vadd.f32 %v985, 1.4214138
        %v1002 = vadd.f32 %v986, 1.4214138
        %v1003 = vadd.f32 %v987, 1.4214138
        %v1004 = vadd.f32 %v988, 1.4214138
        %v1005 = vadd.f32 %v989, 1.4214138
        %v1006 = vadd.f32 %v990, 1.4214138
        %v1007 = vmul.f32 %v991, %v717
        %v1008 = vmul.f32 %v992, %v732
        %v1009 = vmul.f32 %v993, %v747
        %v1010 = vmul.f32 %v994, %v762
        %v1011 = vmul.f32 %v995, %v777
        %v1012 = vmul.f32 %v996, %v792
        %v1013 = vmul.f32 %v997, %v807
        %v1014 = vmul.f32 %v998, %v822
        %v1015 = vmul.f32 %v999, %v837
        %v1016 = vmul.f32 %v1000, %v852
        %v1017 = vmul.f32 %v1001, %v867
        %v1018 = vmul.f32 %v1002, %v882
        %v1019 = vmul.f32 %v1003, %v897
        %v1020 = vmul.f32 %v1004, %v912
        %v1021 = vmul.f32 %v1005, %v927
        %v1022 = vmul.f32 %v1006, %v942
        %v1023 = vadd.f32 %v1007, -0.28449672
        %v1024 = vadd.f32 %v1008, -0.28449672
        %v1025 = vadd.f32 %v1009, -0.28449672
        %v1026 = vadd.f32 %v1010, -0.28449672
        %v1027 = vadd.f32 %v1011, -0.28449672
        %v1028 = vadd.f32 %v1012, -0.28449672
        %v1029 = vadd.f32 %v1013, -0.28449672
        %v1030 = vadd.f32 %v1014, -0.28449672
        %v1031 = vadd.f32 %v1015, -0.28449672
        %v1032 = vadd.f32 %v1016, -0.28449672
        %v1033 = vadd.f32 %v1017, -0.28449672
        %v1034 = vadd.f32 %v1018, -0.28449672
        %v1035 = vadd.f32 %v1019, -0.28449672
        %v1036 = vadd.f32 %v1020, -0.28449672
        %v1037 = vadd.f32 %v1021, -0.28449672
        %v1038 = vadd.f32 %v1022, -0.28449672
        %v1039 = vmul.f32 %v1023, %v717
        %v1040 = vmul.f32 %v1024, %v732
        %v1041 = vmul.f32 %v1025, %v747
        %v1042 = vmul.f32 %v1026, %v762
        %v1043 = vmul.f32 %v1027, %v777
        %v1044 = vmul.f32 %v1028, %v792
        %v1045 = vmul.f32 %v1029, %v807
        %v1046 = vmul.f32 %v1030, %v822
        %v1047 = vmul.f32 %v1031, %v837
        %v1048 = vmul.f32 %v1032, %v852
        %v1049 = vmul.f32 %v1033, %v867
        %v1050 = vmul.f32 %v1034, %v882
        %v1051 = vmul.f32 %v1035, %v897
        %v1052 = vmul.f32 %v1036, %v912
        %v1053 = vmul.f32 %v1037, %v927
        %v1054 = vmul.f32 %v1038, %v942
        %v1055 = vadd.f32 %v1039, 0.2548296
        %v1056 = vadd.f32 %v1040, 0.2548296
        %v1057 = vadd.f32 %v1041, 0.2548296
        %v1058 = vadd.f32 %v1042, 0.2548296
        %v1059 = vadd.f32 %v1043, 0.2548296
        %v1060 = vadd.f32 %v1044, 0.2548296
        %v1061 = vadd.f32 %v1045, 0.2548296
        %v1062 = vadd.f32 %v1046, 0.2548296
        %v1063 = vadd.f32 %v1047, 0.2548296
        %v1064 = vadd.f32 %v1048, 0.2548296
        %v1065 = vadd.f32 %v1049, 0.2548296
        %v1066 = vadd.f32 %v1050, 0.2548296
        %v1067 = vadd.f32 %v1051, 0.2548296
        %v1068 = vadd.f32 %v1052, 0.2548296
        %v1069 = vadd.f32 %v1053, 0.2548296
        %v1070 = vadd.f32 %v1054, 0.2548296
        %v1071 = vmul.f32 %v1055, %v717
        %v1072 = vmul.f32 %v1056, %v732
        %v1073 = vmul.f32 %v1057, %v747
        %v1074 = vmul.f32 %v1058, %v762
        %v1075 = vmul.f32 %v1059, %v777
        %v1076 = vmul.f32 %v1060, %v792
        %v1077 = vmul.f32 %v1061, %v807
        %v1078 = vmul.f32 %v1062, %v822
        %v1079 = vmul.f32 %v1063, %v837
        %v1080 = vmul.f32 %v1064, %v852
        %v1081 = vmul.f32 %v1065, %v867
        %v1082 = vmul.f32 %v1066, %v882
        %v1083 = vmul.f32 %v1067, %v897
        %v1084 = vmul.f32 %v1068, %v912
        %v1085 = vmul.f32 %v1069, %v927
        %v1086 = vmul.f32 %v1070, %v942
        %v1087 = vsub.f32 0.0, %v655
        %v1088 = vsub.f32 0.0, %v656
        %v1089 = vsub.f32 0.0, %v657
        %v1090 = vsub.f32 0.0, %v658
        %v1091 = vsub.f32 0.0, %v659
        %v1092 = vsub.f32 0.0, %v660
        %v1093 = vsub.f32 0.0, %v661
        %v1094 = vsub.f32 0.0, %v662
        %v1095 = vsub.f32 0.0, %v663
        %v1096 = vsub.f32 0.0, %v664
        %v1097 = vsub.f32 0.0, %v665
        %v1098 = vsub.f32 0.0, %v666
        %v1099 = vsub.f32 0.0, %v667
        %v1100 = vsub.f32 0.0, %v668
        %v1101 = vsub.f32 0.0, %v669
        %v1102 = vsub.f32 0.0, %v670
        %v1103 = vmul.f32 %v1087, %v655
        %v1104 = vmul.f32 %v1088, %v656
        %v1105 = vmul.f32 %v1089, %v657
        %v1106 = vmul.f32 %v1090, %v658
        %v1107 = vmul.f32 %v1091, %v659
        %v1108 = vmul.f32 %v1092, %v660
        %v1109 = vmul.f32 %v1093, %v661
        %v1110 = vmul.f32 %v1094, %v662
        %v1111 = vmul.f32 %v1095, %v663
        %v1112 = vmul.f32 %v1096, %v664
        %v1113 = vmul.f32 %v1097, %v665
        %v1114 = vmul.f32 %v1098, %v666
        %v1115 = vmul.f32 %v1099, %v667
        %v1116 = vmul.f32 %v1100, %v668
        %v1117 = vmul.f32 %v1101, %v669
        %v1118 = vmul.f32 %v1102, %v670
        %v1119 = vmul.f32 %v1103, 1.442695
        %v1120 = vpow.pop %v1119
        %v1121 = vmul.f32 %v1104, 1.442695
        %v1122 = vpow.pop %v1121
        %v1123 = vmul.f32 %v1105, 1.442695
        %v1124 = vpow.pop %v1123
        %v1125 = vmul.f32 %v1106, 1.442695
        %v1126 = vpow.pop %v1125
        %v1127 = vmul.f32 %v1107, 1.442695
        %v1128 = vpow.pop %v1127
        %v1129 = vmul.f32 %v1108, 1.442695
        %v1130 = vpow.pop %v1129
        %v1131 = vmul.f32 %v1109, 1.442695
        %v1132 = vpow.pop %v1131
        %v1133 = vmul.f32 %v1110, 1.442695
        %v1134 = vpow.pop %v1133
        %v1135 = vmul.f32 %v1111, 1.442695
        %v1136 = vpow.pop %v1135
        %v1137 = vmul.f32 %v1112, 1.442695
        %v1138 = vpow.pop %v1137
        %v1139 = vmul.f32 %v1113, 1.442695
        %v1140 = vpow.pop %v1139
        %v1141 = vmul.f32 %v1114, 1.442695
        %v1142 = vpow.pop %v1141
        %v1143 = vmul.f32 %v1115, 1.442695
        %v1144 = vpow.pop %v1143
        %v1145 = vmul.f32 %v1116, 1.442695
        %v1146 = vpow.pop %v1145
        %v1147 = vmul.f32 %v1117, 1.442695
        %v1148 = vpow.pop %v1147
        %v1149 = vmul.f32 %v1118, 1.442695
        %v1150 = vpow.pop %v1149
        %v1151 = vmul.f32 %v1071, %v1120
        %v1152 = vmul.f32 %v1072, %v1122
        %v1153 = vmul.f32 %v1073, %v1124
        %v1154 = vmul.f32 %v1074, %v1126
        %v1155 = vmul.f32 %v1075, %v1128
        %v1156 = vmul.f32 %v1076, %v1130
        %v1157 = vmul.f32 %v1077, %v1132
        %v1158 = vmul.f32 %v1078, %v1134
        %v1159 = vmul.f32 %v1079, %v1136
        %v1160 = vmul.f32 %v1080, %v1138
        %v1161 = vmul.f32 %v1081, %v1140
        %v1162 = vmul.f32 %v1082, %v1142
        %v1163 = vmul.f32 %v1083, %v1144
        %v1164 = vmul.f32 %v1084, %v1146
        %v1165 = vmul.f32 %v1085, %v1148
        %v1166 = vmul.f32 %v1086, %v1150
        %v1167 = vsub.f32 1.0, %v1151
        %v1168 = vsub.f32 1.0, %v1152
        %v1169 = vsub.f32 1.0, %v1153
        %v1170 = vsub.f32 1.0, %v1154
        %v1171 = vsub.f32 1.0, %v1155
        %v1172 = vsub.f32 1.0, %v1156
        %v1173 = vsub.f32 1.0, %v1157
        %v1174 = vsub.f32 1.0, %v1158
        %v1175 = vsub.f32 1.0, %v1159
        %v1176 = vsub.f32 1.0, %v1160
        %v1177 = vsub.f32 1.0, %v1161
        %v1178 = vsub.f32 1.0, %v1162
        %v1179 = vsub.f32 1.0, %v1163
        %v1180 = vsub.f32 1.0, %v1164
        %v1181 = vsub.f32 1.0, %v1165
        %v1182 = vsub.f32 1.0, %v1166
        %v1183 = vmul.f32 %v639, %v1167
        %v1184 = vmul.f32 %v640, %v1168
        %v1185 = vmul.f32 %v641, %v1169
        %v1186 = vmul.f32 %v642, %v1170
        %v1187 = vmul.f32 %v643, %v1171
        %v1188 = vmul.f32 %v644, %v1172
        %v1189 = vmul.f32 %v645, %v1173
        %v1190 = vmul.f32 %v646, %v1174
        %v1191 = vmul.f32 %v647, %v1175
        %v1192 = vmul.f32 %v648, %v1176
        %v1193 = vmul.f32 %v649, %v1177
        %v1194 = vmul.f32 %v650, %v1178
        %v1195 = vmul.f32 %v651, %v1179
        %v1196 = vmul.f32 %v652, %v1180
        %v1197 = vmul.f32 %v653, %v1181
        %v1198 = vmul.f32 %v654, %v1182
        %v1199 = vadd.f32 %v1183, 1.0
        %v1200 = vadd.f32 %v1184, 1.0
        %v1201 = vadd.f32 %v1185, 1.0
        %v1202 = vadd.f32 %v1186, 1.0
        %v1203 = vadd.f32 %v1187, 1.0
        %v1204 = vadd.f32 %v1188, 1.0
        %v1205 = vadd.f32 %v1189, 1.0
        %v1206 = vadd.f32 %v1190, 1.0
        %v1207 = vadd.f32 %v1191, 1.0
        %v1208 = vadd.f32 %v1192, 1.0
        %v1209 = vadd.f32 %v1193, 1.0
        %v1210 = vadd.f32 %v1194, 1.0
        %v1211 = vadd.f32 %v1195, 1.0
        %v1212 = vadd.f32 %v1196, 1.0
        %v1213 = vadd.f32 %v1197, 1.0
        %v1214 = vadd.f32 %v1198, 1.0
        %v1215 = vmul.f32 %v591, %v1199
        %v1216 = vmul.f32 %v592, %v1200
        %v1217 = vmul.f32 %v593, %v1201
        %v1218 = vmul.f32 %v594, %v1202
        %v1219 = vmul.f32 %v595, %v1203
        %v1220 = vmul.f32 %v596, %v1204
        %v1221 = vmul.f32 %v597, %v1205
        %v1222 = vmul.f32 %v598, %v1206
        %v1223 = vmul.f32 %v599, %v1207
        %v1224 = vmul.f32 %v600, %v1208
        %v1225 = vmul.f32 %v601, %v1209
        %v1226 = vmul.f32 %v602, %v1210
        %v1227 = vmul.f32 %v603, %v1211
        %v1228 = vmul.f32 %v604, %v1212
        %v1229 = vmul.f32 %v605, %v1213
        %v1230 = vmul.f32 %v606, %v1214
        %v1231 = vld [vmem:[#allocation2] sm:$0xff]
        %v1232 = vld [vmem:[#allocation2 + $0x8] sm:$0xff]
        %v1233 = vld [vmem:[#allocation2 + $0x10] sm:$0xff]
        %v1234 = vld [vmem:[#allocation2 + $0x18] sm:$0xff]
        %v1235 = vld [vmem:[#allocation2 + $0x20] sm:$0xff]
        %v1236 = vld [vmem:[#allocation2 + $0x28] sm:$0xff]
        %v1237 = vld [vmem:[#allocation2 + $0x30] sm:$0xff]
        %v1238 = vld [vmem:[#allocation2 + $0x38] sm:$0xff]
        %v1239 = vpack.c.bf16 %v1217, %v1215
        %v1240 = vpack.c.bf16 %v1218, %v1216
        %v1241 = vpack.c.bf16 %v1221, %v1219
        %v1242 = vpack.c.bf16 %v1222, %v1220
        %v1243 = vpack.c.bf16 %v1225, %v1223
        %v1244 = vpack.c.bf16 %v1226, %v1224
        %v1245 = vpack.c.bf16 %v1229, %v1227
        %v1246 = vpack.c.bf16 %v1230, %v1228
        %v1247 = vld [vmem:[%s334] sm:$0xf]
        %v1248 = vld [vmem:[%s334 + $0x4] sm:$0xf]
        %v1249 = vld [vmem:[%s334 + $0x8] sm:$0xf]
        %v1250 = vld [vmem:[%s334 + $0xc] sm:$0xf]
        %v1251 = vld [vmem:[%s334 + $0x10] sm:$0xf]
        %v1252 = vld [vmem:[%s334 + $0x14] sm:$0xf]
        %v1253 = vld [vmem:[%s334 + $0x18] sm:$0xf]
        %v1254 = vld [vmem:[%s334 + $0x1c] sm:$0xf]
        %v1255 = vld [vmem:[%s334 + $0x20] sm:$0xf]
        %v1256 = vld [vmem:[%s334 + $0x24] sm:$0xf]
        %v1257 = vld [vmem:[%s334 + $0x28] sm:$0xf]
        %v1258 = vld [vmem:[%s334 + $0x2c] sm:$0xf]
        %v1259 = vld [vmem:[%s334 + $0x30] sm:$0xf]
        %v1260 = vld [vmem:[%s334 + $0x34] sm:$0xf]
        %v1261 = vld [vmem:[%s334 + $0x38] sm:$0xf]
        %v1262 = vld [vmem:[%s334 + $0x3c] sm:$0xf]
        %v1263 = vld [vmem:[%s334 + $0x40] sm:$0xf]
        %v1264 = vld [vmem:[%s334 + $0x44] sm:$0xf]
        %v1265 = vld [vmem:[%s334 + $0x48] sm:$0xf]
        %v1266 = vld [vmem:[%s334 + $0x4c] sm:$0xf]
        %v1267 = vld [vmem:[%s334 + $0x50] sm:$0xf]
        %v1268 = vld [vmem:[%s334 + $0x54] sm:$0xf]
        %v1269 = vld [vmem:[%s334 + $0x58] sm:$0xf]
        %v1270 = vld [vmem:[%s334 + $0x5c] sm:$0xf]
        %v1271 = vld [vmem:[%s334 + $0x60] sm:$0xf]
        %v1272 = vld [vmem:[%s334 + $0x64] sm:$0xf]
        %v1273 = vld [vmem:[%s334 + $0x68] sm:$0xf]
        %v1274 = vld [vmem:[%s334 + $0x6c] sm:$0xf]
        %v1275 = vld [vmem:[%s334 + $0x70] sm:$0xf]
        %v1276 = vld [vmem:[%s334 + $0x74] sm:$0xf]
        %v1277 = vld [vmem:[%s334 + $0x78] sm:$0xf]
        %v1278 = vld [vmem:[%s334 + $0x7c] sm:$0xf]
        %v1311 = vunpack.c.l.b16 %v1247
        %v1312 = vunpack.c.l.b16 %v1248
        %v1313 = vunpack.c.l.b16 %v1249
        %v1314 = vunpack.c.l.b16 %v1250
        %v1315 = vunpack.c.l.b16 %v1251
        %v1316 = vunpack.c.l.b16 %v1252
        %v1317 = vunpack.c.l.b16 %v1253
        %v1318 = vunpack.c.l.b16 %v1254
        %v1319 = vunpack.c.l.b16 %v1255
        %v1320 = vunpack.c.l.b16 %v1256
        %v1321 = vunpack.c.l.b16 %v1257
        %v1322 = vunpack.c.l.b16 %v1258
        %v1323 = vunpack.c.l.b16 %v1259
        %v1324 = vunpack.c.l.b16 %v1260
        %v1325 = vunpack.c.l.b16 %v1261
        %v1326 = vunpack.c.l.b16 %v1262
        %v1327 = vunpack.c.l.b16 %v1263
        %v1328 = vunpack.c.l.b16 %v1264
        %v1329 = vunpack.c.l.b16 %v1265
        %v1330 = vunpack.c.l.b16 %v1266
        %v1331 = vunpack.c.l.b16 %v1267
        %v1332 = vunpack.c.l.b16 %v1268
        %v1333 = vunpack.c.l.b16 %v1269
        %v1334 = vunpack.c.l.b16 %v1270
        %v1335 = vunpack.c.l.b16 %v1271
        %v1336 = vunpack.c.l.b16 %v1272
        %v1337 = vunpack.c.l.b16 %v1273
        %v1338 = vunpack.c.l.b16 %v1274
        %v1339 = vunpack.c.l.b16 %v1275
        %v1340 = vunpack.c.l.b16 %v1276
        %v1341 = vunpack.c.l.b16 %v1277
        %v1342 = vunpack.c.l.b16 %v1278
        %v1343 = vpack.c.b16 %v1312, %v1311
        %v1344 = vpack.c.b16 %v1314, %v1313
        %v1345 = vpack.c.b16 %v1316, %v1315
        %v1346 = vpack.c.b16 %v1318, %v1317
        %v1347 = vpack.c.b16 %v1320, %v1319
        %v1348 = vpack.c.b16 %v1322, %v1321
        %v1349 = vpack.c.b16 %v1324, %v1323
        %v1350 = vpack.c.b16 %v1326, %v1325
        %v1351 = vpack.c.b16 %v1328, %v1327
        %v1352 = vpack.c.b16 %v1330, %v1329
        %v1353 = vpack.c.b16 %v1332, %v1331
        %v1354 = vpack.c.b16 %v1334, %v1333
        %v1355 = vpack.c.b16 %v1336, %v1335
        %v1356 = vpack.c.b16 %v1338, %v1337
        %v1357 = vpack.c.b16 %v1340, %v1339
        %v1358 = vpack.c.b16 %v1342, %v1341
        %1375 = vmatpush.bf16.msra.mxu0 %v1350
        %1376 = vmatpush.bf16.msra.mxu0 %v1349
        %1377 = vmatpush.bf16.msra.mxu0 %v1348
        %1378 = vmatpush.bf16.msra.mxu0 %v1347
        %1379 = vmatpush.bf16.msra.mxu0 %v1346
        %1380 = vmatpush.bf16.msra.mxu0 %v1345
        %1381 = vmatpush.bf16.msra.mxu0 %v1344
        %1382 = vmatpush.bf16.msra.mxu0 %v1343
        %1383 = vmatmul.bf16.gmra.mxu0 %v1239
        %v1384 = vpop.f32.mrf.mxu0
        %v1385 = vadd.f32 0.0, %v1384
        %v1386 = vpop.f32.mrf.mxu0
        %v1387 = vadd.f32 0.0, %v1386
        %1388 = vmatmul.bf16.gmra.mxu0 %v1241
        %v1389 = vpop.f32.mrf.mxu0
        %v1390 = vadd.f32 0.0, %v1389
        %v1391 = vpop.f32.mrf.mxu0
        %v1392 = vadd.f32 0.0, %v1391
        %1393 = vmatmul.bf16.gmra.mxu0 %v1243
        %v1394 = vpop.f32.mrf.mxu0
        %v1395 = vadd.f32 0.0, %v1394
        %v1396 = vpop.f32.mrf.mxu0
        %v1397 = vadd.f32 0.0, %v1396
        %1398 = vmatmul.bf16.gmra.mxu0 %v1245
        %v1399 = vpop.f32.mrf.mxu0
        %v1400 = vadd.f32 0.0, %v1399
        %v1401 = vpop.f32.mrf.mxu0
        %v1402 = vadd.f32 0.0, %v1401
        %1403 = vdwg.mxu0
        %1404 = vmatpush.bf16.msra.mxu0 %v1358
        %1405 = vmatpush.bf16.msra.mxu0 %v1357
        %1406 = vmatpush.bf16.msra.mxu0 %v1356
        %1407 = vmatpush.bf16.msra.mxu0 %v1355
        %1408 = vmatpush.bf16.msra.mxu0 %v1354
        %1409 = vmatpush.bf16.msra.mxu0 %v1353
        %1410 = vmatpush.bf16.msra.mxu0 %v1352
        %1411 = vmatpush.bf16.msra.mxu0 %v1351
        %1412 = vmatmul.bf16.gmra.mxu0 %v1240
        %v1413 = vpop.f32.mrf.mxu0
        %v1414 = vadd.f32 %v1385, %v1413
        %v1415 = vpop.f32.mrf.mxu0
        %v1416 = vadd.f32 %v1387, %v1415
        %1417 = vmatmul.bf16.gmra.mxu0 %v1242
        %v1418 = vpop.f32.mrf.mxu0
        %v1419 = vadd.f32 %v1390, %v1418
        %v1420 = vpop.f32.mrf.mxu0
        %v1421 = vadd.f32 %v1392, %v1420
        %1422 = vmatmul.bf16.gmra.mxu0 %v1244
        %v1423 = vpop.f32.mrf.mxu0
        %v1424 = vadd.f32 %v1395, %v1423
        %v1425 = vpop.f32.mrf.mxu0
        %v1426 = vadd.f32 %v1397, %v1425
        %1427 = vmatmul.bf16.gmra.mxu0 %v1246
        %v1428 = vpop.f32.mrf.mxu0
        %v1429 = vadd.f32 %v1400, %v1428
        %v1430 = vpop.f32.mrf.mxu0
        %v1431 = vadd.f32 %v1402, %v1430
        %1432 = vdwg.mxu0
        %v1433 = vadd.f32 %v1231, %v1414
        %v1434 = vadd.f32 %v1232, %v1416
        %v1435 = vadd.f32 %v1233, %v1419
        %v1436 = vadd.f32 %v1234, %v1421
        %v1437 = vadd.f32 %v1235, %v1424
        %v1438 = vadd.f32 %v1236, %v1426
        %v1439 = vadd.f32 %v1237, %v1429
        %v1440 = vadd.f32 %v1238, %v1431
        %1441 = vst [vmem:[#allocation2] sm:$0xff] %v1433
        %1442 = vst [vmem:[#allocation2 + $0x8] sm:$0xff] %v1434
        %1443 = vst [vmem:[#allocation2 + $0x10] sm:$0xff] %v1435
        %1444 = vst [vmem:[#allocation2 + $0x18] sm:$0xff] %v1436
        %1445 = vst [vmem:[#allocation2 + $0x20] sm:$0xff] %v1437
        %1446 = vst [vmem:[#allocation2 + $0x28] sm:$0xff] %v1438
        %1447 = vst [vmem:[#allocation2 + $0x30] sm:$0xff] %v1439
        %1448 = vst [vmem:[#allocation2 + $0x38] sm:$0xff] %v1440
        %p1449 = scmp.eq.s32.totalorder %s33, 1
        // Predicated region
        $region61: #{tpu_custom_call.1} parent=39 // pred_check
          %p1450 = pneg %p1449
        $region62: #{tpu_custom_call.1} parent=39 // pred_check_branch
          %1452 = sbr.rel (%p1450) target = $region64
        $region63: #{tpu_custom_call.1} parent=39 // pred_region
          %v1453 = vld [vmem:[#allocation2] sm:$0xff]
          %v1454 = vld [vmem:[#allocation2 + $0x8] sm:$0xff]
          %v1455 = vld [vmem:[#allocation2 + $0x10] sm:$0xff]
          %v1456 = vld [vmem:[#allocation2 + $0x18] sm:$0xff]
          %v1457 = vld [vmem:[#allocation2 + $0x20] sm:$0xff]
          %v1458 = vld [vmem:[#allocation2 + $0x28] sm:$0xff]
          %v1459 = vld [vmem:[#allocation2 + $0x30] sm:$0xff]
          %v1460 = vld [vmem:[#allocation2 + $0x38] sm:$0xff]
          %1461 = vst [vmem:[%s376] sm:$0xff] %v1453
          %1462 = vst [vmem:[%s376 + $0x8] sm:$0xff] %v1454
          %1463 = vst [vmem:[%s376 + $0x10] sm:$0xff] %v1455
          %1464 = vst [vmem:[%s376 + $0x18] sm:$0xff] %v1456
          %1465 = vst [vmem:[%s376 + $0x20] sm:$0xff] %v1457
          %1466 = vst [vmem:[%s376 + $0x28] sm:$0xff] %v1458
          %1467 = vst [vmem:[%s376 + $0x30] sm:$0xff] %v1459
          %1468 = vst [vmem:[%s376 + $0x38] sm:$0xff] %v1460
        $region64: #{tpu_custom_call.1} parent=39 // pred_fallthru
          _
        %s1469 = sand.u32 %s173, 1
        %s1470 = scalar_lea.sflag [#allocation5], %s1469
        %s1471 = sand.u32 %s173, 1
        %s1472 = smul.addr %s1471, 64
        %s1473 = scalar_lea.vmem [#allocation11], %s1472
        // Predicated region
        $region65: #{tpu_custom_call.1} parent=39 // pred_check
          %p1474 = pneg %p183
        $region66: #{tpu_custom_call.1} parent=39 // pred_check_branch
          %1476 = sbr.rel (%p1474) target = $region68
        $region67: #{tpu_custom_call.1} parent=39 // pred_region
          %s1477 = smul.u32 8, %s32
          %1479 = vsyncadd %s1470, 0
          %s1480 = smul.addr %s1477, 8
          %s1481 = scalar_lea.hbm %s5, %s1480
          %s1482 = sshll.u32 %s1473, 4
          %s1483 = int_to_ptr.vmem [resolvable:$true] %s1482
          %s1484 = sshll.u32 %s1481, 4
          %s1485 = int_to_ptr.hbm [resolvable:$true] %s1484
          %1490 = dma.vmem_to_hbm [thread:$0]  %s1483, 1024, %s1485, %s1470, 128, 128, 8
        $region68: #{tpu_custom_call.1} parent=39 // pred_fallthru
          _
      $region40: #{tpu_custom_call.1} parent=5 // pred_fallthru
        _
      %p1491 = scmp.le.s32.totalorder 2, %s23
      // Predicated region
      $region69: #{tpu_custom_call.1} parent=5 // pred_check
        %p1492 = pneg %p1491
      $region70: #{tpu_custom_call.1} parent=5 // pred_check_branch
        %1494 = sbr.rel (%p1492) target = $region72
      $region71: #{tpu_custom_call.1} parent=5 // pred_region
        %s1495 = ssub.s32 %s23, 2
        // Predicated region
        $region73: #{tpu_custom_call.1} parent=71 // pred_check
          %p1496 = pneg %p189
        $region74: #{tpu_custom_call.1} parent=71 // pred_check_branch
          %1498 = sbr.rel (%p1496) target = $region76
        $region75: #{tpu_custom_call.1} parent=71 // pred_region
          %s1499 = sand.u32 %s174, 1
          %s1500 = scalar_lea.sflag [#allocation5], %s1499
          %s1501 = sand.u32 %s174, 1
          %s1502 = smul.addr %s1501, 64
          %s1503 = scalar_lea.vmem [#allocation11], %s1502
          %1505 = dma.done %s1500, 1024
        $region76: #{tpu_custom_call.1} parent=71 // pred_fallthru
          _
      $region72: #{tpu_custom_call.1} parent=5 // pred_fallthru
        _
    $region6: #{tpu_custom_call.1} parent=1 // loop_footer
      %s27 = sadd.s32 1, %s23
    $region7: #{tpu_custom_call.1} parent=1 // loop_footer_branch
      %22 = sbr.rel target = $region3
    $region8: #{tpu_custom_call.1} parent=1 // loop_exit
      _
    %1506 = vsyncpa [#allocation4], 1
    %s1507 = scalar_lea.sflag [#allocation4], 1
    %1508 = vsyncpa %s1507, 1
    %1509 = vsyncpa [#allocation7], 1
    %s1510 = scalar_lea.sflag [#allocation7], 1
    %1511 = vsyncpa %s1510, 1
    %1512 = vsyncpa [#allocation10], 1
    %s1513 = scalar_lea.sflag [#allocation10], 1
    %1514 = vsyncpa %s1513, 1
    %1515 = vsyncpa [#allocation5], 1
    %s1516 = scalar_lea.sflag [#allocation5], 1
    %1517 = vsyncpa %s1516, 1

</llo_original>
